<compile_context>
chip_gen: v7x
topology: tpu7x:2x2x1
jax: 0.10.0
libtpu: 0.0.40
codegen_flags: <defaults>
</compile_context>

<pallas_src>
import functools

import numpy as np
import jax
import jax.numpy as jnp
from jax import lax
from jax.experimental import pallas as pl
from jax.experimental.pallas import tpu as pltpu


def _round_up(v, m):
    return (v + m - 1) // m * m


def _pad2(a, rows, cols):
    out = jnp.zeros((rows, cols), jnp.float32)
    return out.at[: a.shape[0], : a.shape[1]].set(a.astype(jnp.float32))


# ---------------------------------------------------------------------------
# Fused kernel: GATConv -> ReLU -> BN -> (Dropout) -> GATConv -> ReLU -> BN ->
# global_add_pool -> 4-layer MLP -> LogSoftmax.  Everything lane-padded to 128.
# ---------------------------------------------------------------------------
def _fused_gat_kernel(x_ref, adj_ref, pool_ref,
                      w1_ref, b1_ref, as1_ref, ad1_ref, sc1_ref, sh1_ref,
                      w2_ref, b2_ref, as2_ref, ad2_ref, sc2_ref, sh2_ref,
                      mw1_ref, mb1_ref, mw2_ref, mb2_ref, mw3_ref, mb3_ref,
                      mw4_ref, mb4_ref, out_ref, *, out_valid):
    f32, bf16 = jnp.float32, jnp.bfloat16
    adj_mask = adj_ref[...] != 0                                          # int8 compared directly

    def gat_layer(x, w_ref, b_ref, asrc_ref, adst_ref, scale_ref, shift_ref):
        # Node projection h = X W (once): bf16 operands, f32 accumulation (MXU).
        h = jnp.dot(x.astype(bf16), w_ref[...].astype(bf16),
                    preferred_element_type=f32)                           # (N, H)
        # Attention projections without materializing h^T:
        #   a_src[j] = att_src . h_j -> (1, N);  a_dst[i] = att_dst . h_i -> (N, 1)
        a_src = lax.dot_general(asrc_ref[...], h, (((1,), (1,)), ((), ())),
                                preferred_element_type=f32)               # (1, N)
        a_dst = lax.dot_general(h, adst_ref[...], (((1,), (1,)), ((), ())),
                                preferred_element_type=f32)               # (N, 1)
        # e[i, j] for edge j -> i: outer sum, LeakyReLU(0.2), mask non-edges.
        e = a_dst + a_src                                                 # (N, N)
        e = jnp.where(e > 0, e, 0.2 * e)
        e = jnp.where(adj_mask, e, jnp.float32(-1e30))
        # Row-wise masked softmax; masked entries underflow to exactly 0.
        m = jnp.max(e, axis=1, keepdims=True)
        p = jnp.exp(e - m)                                                # (N, N) f32
        s = jnp.sum(p, axis=1, keepdims=True)                             # >= 1 (self-loops)
        # Aggregate first, normalize after (one (N,H) multiply, no (N,N) divide).
        agg = jnp.dot(p.astype(bf16), h.astype(bf16), preferred_element_type=f32)
        out = agg * pl.reciprocal(s, approx=True) + b_ref[...]
        out = jnp.maximum(out, 0.0)                                       # ReLU
        # BatchNorm1d (eval) folded to scale/shift; Dropout(p=0.2) identity in eval.
        return out * scale_ref[...] + shift_ref[...]

    h1 = gat_layer(x_ref[...], w1_ref, b1_ref, as1_ref, ad1_ref, sc1_ref, sh1_ref)
    h2 = gat_layer(h1, w2_ref, b2_ref, as2_ref, ad2_ref, sc2_ref, sh2_ref)

    # global_add_pool: one-hot (G, N) @ (N, H); padded nodes have all-zero pool columns.
    g = jnp.dot(pool_ref[...].astype(bf16), h2.astype(bf16), preferred_element_type=f32)

    # 4-layer MLP (tiny, kept f32) + LogSoftmax masked to the valid output lanes.
    g = jnp.maximum(jnp.dot(g, mw1_ref[...], preferred_element_type=f32) + mb1_ref[...], 0.0)
    g = jnp.maximum(jnp.dot(g, mw2_ref[...], preferred_element_type=f32) + mb2_ref[...], 0.0)
    g = jnp.maximum(jnp.dot(g, mw3_ref[...], preferred_element_type=f32) + mb3_ref[...], 0.0)
    logits = jnp.dot(g, mw4_ref[...], preferred_element_type=f32) + mb4_ref[...]   # (G, O_pad)
    col = lax.broadcasted_iota(jnp.int32, logits.shape, 1)
    logits = jnp.where(col < out_valid, logits, jnp.float32(-1e30))       # exclude lane padding
    zmax = jnp.max(logits, axis=1, keepdims=True)
    z = logits - zmax
    lse = jnp.log(jnp.sum(jnp.exp(z), axis=1, keepdims=True))
    out_ref[...] = z - lse


# ---------------------------------------------------------------------------
# Host-side helpers (run once, outside jit; reusable across forwards)
# ---------------------------------------------------------------------------
def build_dense_graph(edge_index, batch, num_nodes, num_graphs, n_pad, g_pad):
    """Dense adjacency (adj[dst, src]=1, + self-loops) and one-hot pooling matrix.
    Built with numpy outside the jitted forward; cache/reuse for static graphs."""
    ei = np.asarray(edge_index)
    adj = np.zeros((n_pad, n_pad), np.int8)
    adj[ei[1], ei[0]] = 1
    np.fill_diagonal(adj, 1)   # GATConv default add_self_loops=True (also keeps padded rows finite)
    pool = np.zeros((g_pad, n_pad), np.float32)
    pool[np.asarray(batch), np.arange(num_nodes)] = 1.0
    return jnp.asarray(adj), jnp.asarray(pool)


def prepare_params(params):
    """Fold eval-mode BatchNorm into scale/shift and zero-pad every parameter to lane-dense
    (multiples of 128) shapes.  Called once; results reused across forwards."""
    f_in, hid = params["w1"].shape
    out_dim = params["mw4"].shape[1]
    f_pad, h_pad, o_pad = _round_up(f_in, 128), _round_up(hid, 128), _round_up(out_dim, 128)

    def bn_fold(bn):  # rows: gamma, beta, running_mean, running_var (eval-mode BN -> FMA)
        gamma, beta, mean, var = bn[0:1], bn[1:2], bn[2:3], bn[3:4]
        scale = gamma * lax.rsqrt(var + 1e-5)
        return scale, beta - mean * scale

    sc1, sh1 = bn_fold(params["bn1"])
    sc2, sh2 = bn_fold(params["bn2"])

    pp = dict(
        w1=_pad2(params["w1"], f_pad, h_pad), b1=_pad2(params["b1"], 1, h_pad),
        as1=_pad2(params["att1"][0:1], 1, h_pad), ad1=_pad2(params["att1"][1:2], 1, h_pad),
        sc1=_pad2(sc1, 1, h_pad), sh1=_pad2(sh1, 1, h_pad),
        w2=_pad2(params["w2"], h_pad, h_pad), b2=_pad2(params["b2"], 1, h_pad),
        as2=_pad2(params["att2"][0:1], 1, h_pad), ad2=_pad2(params["att2"][1:2], 1, h_pad),
        sc2=_pad2(sc2, 1, h_pad), sh2=_pad2(sh2, 1, h_pad),
        mw1=_pad2(params["mw1"], h_pad, h_pad), mb1=_pad2(params["mb1"], 1, h_pad),
        mw2=_pad2(params["mw2"], h_pad, h_pad), mb2=_pad2(params["mb2"], 1, h_pad),
        mw3=_pad2(params["mw3"], h_pad, h_pad), mb3=_pad2(params["mb3"], 1, h_pad),
        mw4=_pad2(params["mw4"], h_pad, o_pad), mb4=_pad2(params["mb4"], 1, o_pad),
    )
    return pp, out_dim


# ---------------------------------------------------------------------------
# Forward wrapper
# ---------------------------------------------------------------------------
@functools.partial(jax.jit, static_argnames=("num_graphs", "out_dim"))
def gat_model_forward(x, adj, pool, pp, num_graphs, out_dim):
    """x: (N, F) f32; adj: (N_pad, N_pad) int8 (adj[dst, src]=1, with self-loops);
    pool: (G_pad, N_pad) one-hot pooling matrix; pp: lane-padded params from prepare_params."""
    n, f = x.shape
    n_pad = adj.shape[0]
    f_pad, h_pad = pp["w1"].shape
    o_pad = pp["mw4"].shape[1]
    g_pad = pool.shape[0]

    x_p = jnp.zeros((n_pad, f_pad), jnp.float32).at[:n, :f].set(x.astype(jnp.float32))

    vmem = pl.BlockSpec(memory_space=pltpu.MemorySpace.VMEM)
    logp = pl.pallas_call(
        functools.partial(_fused_gat_kernel, out_valid=out_dim),
        out_shape=jax.ShapeDtypeStruct((g_pad, o_pad), jnp.float32),
        in_specs=[vmem] * 23,
        out_specs=vmem,
    )(x_p, adj, pool,
      pp["w1"], pp["b1"], pp["as1"], pp["ad1"], pp["sc1"], pp["sh1"],
      pp["w2"], pp["b2"], pp["as2"], pp["ad2"], pp["sc2"], pp["sh2"],
      pp["mw1"], pp["mb1"], pp["mw2"], pp["mb2"], pp["mw3"], pp["mb3"],
      pp["mw4"], pp["mb4"])
    return logp[:num_graphs, :out_dim]


def _init_params(key, input_dim, hidden_dim, output_dim):
    ks = jax.random.split(key, 16)

    def glorot(k, shape):
        lim = (6.0 / (shape[0] + shape[1])) ** 0.5
        return jax.random.uniform(k, shape, jnp.float32, -lim, lim)

    def linear(kw, kb, fan_in, fan_out):
        bound = 1.0 / (fan_in ** 0.5)
        w = jax.random.uniform(kw, (fan_in, fan_out), jnp.float32, -bound, bound)
        b = jax.random.uniform(kb, (1, fan_out), jnp.float32, -bound, bound)
        return w, b

    # BatchNorm1d default: gamma=1, beta=0, running_mean=0, running_var=1 (rows: g, b, mean, var)
    bn_default = jnp.stack([jnp.ones(hidden_dim), jnp.zeros(hidden_dim),
                            jnp.zeros(hidden_dim), jnp.ones(hidden_dim)]).astype(jnp.float32)

    mw1, mb1 = linear(ks[6], ks[7], hidden_dim, hidden_dim)
    mw2, mb2 = linear(ks[8], ks[9], hidden_dim, hidden_dim)
    mw3, mb3 = linear(ks[10], ks[11], hidden_dim, hidden_dim)
    mw4, mb4 = linear(ks[12], ks[13], hidden_dim, output_dim)

    return dict(
        w1=glorot(ks[0], (input_dim, hidden_dim)),
        att1=glorot(ks[1], (2, hidden_dim)),          # row 0: att_src, row 1: att_dst
        b1=jnp.zeros((1, hidden_dim), jnp.float32),
        bn1=bn_default,
        w2=glorot(ks[2], (hidden_dim, hidden_dim)),
        att2=glorot(ks[3], (2, hidden_dim)),
        b2=jnp.zeros((1, hidden_dim), jnp.float32),
        bn2=bn_default,
        mw1=mw1, mb1=mb1, mw2=mw2, mb2=mb2, mw3=mw3, mb3=mb3, mw4=mw4, mb4=mb4,
    )


if __name__ == "__main__":
    # Shapes consistent with the module: hidden_dim=9, output_dim=2, num_heads=1.
    NUM_GRAPHS, NODES_PER_GRAPH = 2, 24
    N = NUM_GRAPHS * NODES_PER_GRAPH
    INPUT_DIM, HIDDEN_DIM, OUTPUT_DIM = 7, 9, 2

    key = jax.random.PRNGKey(0)
    k_x, k_p = jax.random.split(key)
    x = jax.random.normal(k_x, (N, INPUT_DIM), jnp.float32)

    # Bidirectional ring edges within each graph (no duplicate edges).
    src, dst = [], []
    for g in range(NUM_GRAPHS):
        base = g * NODES_PER_GRAPH
        for i in range(NODES_PER_GRAPH):
            a, b = base + i, base + (i + 1) % NODES_PER_GRAPH
            src += [a, b]
            dst += [b, a]
    edge_index = np.array([src, dst], dtype=np.int32)
    batch = np.repeat(np.arange(NUM_GRAPHS, dtype=np.int32), NODES_PER_GRAPH)

    params = _init_params(k_p, INPUT_DIM, HIDDEN_DIM, OUTPUT_DIM)
    pp, out_dim = prepare_params(params)

    n_pad = _round_up(N, 128)
    g_pad = _round_up(NUM_GRAPHS, 8)
    adj, pool = build_dense_graph(edge_index, batch, N, NUM_GRAPHS, n_pad, g_pad)

    out = gat_model_forward(x, adj, pool, pp, num_graphs=NUM_GRAPHS, out_dim=out_dim)
    out = jax.block_until_ready(out)
    assert out.shape == (NUM_GRAPHS, OUTPUT_DIM)
    assert bool(jnp.all(jnp.isfinite(out)))
    # log-softmax rows must sum (in probability space) to ~1
    assert bool(jnp.allclose(jnp.sum(jnp.exp(out), axis=1), 1.0, atol=1e-4))
    print("KERNEL_OK")
</pallas_src>

<mosaic_0001>
module attributes {stable_mosaic.version = 11 : i64} {
  func.func @_fused_gat_kernel(%arg0: memref<128x128xf32, #tpu.memory_space<vmem>>, %arg1: memref<128x128xi8, #tpu.memory_space<vmem>>, %arg2: memref<8x128xf32, #tpu.memory_space<vmem>>, %arg3: memref<128x128xf32, #tpu.memory_space<vmem>>, %arg4: memref<1x128xf32, #tpu.memory_space<vmem>>, %arg5: memref<1x128xf32, #tpu.memory_space<vmem>>, %arg6: memref<1x128xf32, #tpu.memory_space<vmem>>, %arg7: memref<1x128xf32, #tpu.memory_space<vmem>>, %arg8: memref<1x128xf32, #tpu.memory_space<vmem>>, %arg9: memref<128x128xf32, #tpu.memory_space<vmem>>, %arg10: memref<1x128xf32, #tpu.memory_space<vmem>>, %arg11: memref<1x128xf32, #tpu.memory_space<vmem>>, %arg12: memref<1x128xf32, #tpu.memory_space<vmem>>, %arg13: memref<1x128xf32, #tpu.memory_space<vmem>>, %arg14: memref<1x128xf32, #tpu.memory_space<vmem>>, %arg15: memref<128x128xf32, #tpu.memory_space<vmem>>, %arg16: memref<1x128xf32, #tpu.memory_space<vmem>>, %arg17: memref<128x128xf32, #tpu.memory_space<vmem>>, %arg18: memref<1x128xf32, #tpu.memory_space<vmem>>, %arg19: memref<128x128xf32, #tpu.memory_space<vmem>>, %arg20: memref<1x128xf32, #tpu.memory_space<vmem>>, %arg21: memref<128x128xf32, #tpu.memory_space<vmem>>, %arg22: memref<1x128xf32, #tpu.memory_space<vmem>>, %arg23: memref<8x128xf32, #tpu.memory_space<vmem>>) attributes {dimension_semantics = [], scalar_prefetch = 0 : i64, scratch_operands = 0 : i64, tpu.core_type = #tpu.core_type<tc>} {
    %c0 = arith.constant 0 : index
    %c0_0 = arith.constant 0 : index
    %0 = vector.load %arg1[%c0, %c0_0] : memref<128x128xi8, #tpu.memory_space<vmem>>, vector<128x128xi8>
    %c0_i8 = arith.constant 0 : i8
    %1 = vector.broadcast %c0_i8 : i8 to vector<128x128xi8>
    %2 = arith.cmpi ne, %0, %1 : vector<128x128xi8>
    %c0_1 = arith.constant 0 : index
    %c0_2 = arith.constant 0 : index
    %3 = vector.load %arg0[%c0_1, %c0_2] : memref<128x128xf32, #tpu.memory_space<vmem>>, vector<128x128xf32>
    %4 = arith.truncf %3 : vector<128x128xf32> to vector<128x128xbf16>
    %c0_3 = arith.constant 0 : index
    %c0_4 = arith.constant 0 : index
    %5 = vector.load %arg3[%c0_3, %c0_4] : memref<128x128xf32, #tpu.memory_space<vmem>>, vector<128x128xf32>
    %6 = arith.truncf %5 : vector<128x128xf32> to vector<128x128xbf16>
    %cst = arith.constant dense<0.000000e+00> : vector<128x128xf32>
    %7 = tpu.matmul %4, %6, %cst {dimension_numbers = #tpu.dot_dimension_numbers<[1], [0], [0], [1], [0, 0, 1, 1], [], []>} : vector<128x128xbf16>, vector<128x128xbf16>, vector<128x128xf32> -> vector<128x128xf32>
    %c0_5 = arith.constant 0 : index
    %c0_6 = arith.constant 0 : index
    %8 = vector.load %arg5[%c0_5, %c0_6] : memref<1x128xf32, #tpu.memory_space<vmem>>, vector<1x128xf32>
    %cst_7 = arith.constant dense<0.000000e+00> : vector<1x128xf32>
    %9 = tpu.matmul %8, %7, %cst_7 {dimension_numbers = #tpu.dot_dimension_numbers<[1], [1], [0], [0], [0, 0, 1, 0], [], []>} : vector<1x128xf32>, vector<128x128xf32>, vector<1x128xf32> -> vector<1x128xf32>
    %c0_8 = arith.constant 0 : index
    %c0_9 = arith.constant 0 : index
    %10 = vector.load %arg6[%c0_8, %c0_9] : memref<1x128xf32, #tpu.memory_space<vmem>>, vector<1x128xf32>
    %cst_10 = arith.constant dense<0.000000e+00> : vector<128x1xf32>
    %11 = tpu.matmul %7, %10, %cst_10 {dimension_numbers = #tpu.dot_dimension_numbers<[1], [1], [0], [0], [0, 0, 1, 0], [], []>} : vector<128x128xf32>, vector<1x128xf32>, vector<128x1xf32> -> vector<128x1xf32>
    %12 = vector.broadcast %11 : vector<128x1xf32> to vector<128x128xf32>
    %13 = vector.broadcast %9 : vector<1x128xf32> to vector<128x128xf32>
    %14 = arith.addf %12, %13 : vector<128x128xf32>
    %cst_11 = arith.constant 0.000000e+00 : f32
    %15 = vector.broadcast %cst_11 : f32 to vector<128x128xf32>
    %16 = arith.cmpf ogt, %14, %15 : vector<128x128xf32>
    %cst_12 = arith.constant 2.000000e-01 : f32
    %17 = vector.broadcast %cst_12 : f32 to vector<128x128xf32>
    %18 = arith.mulf %17, %14 : vector<128x128xf32>
    %19 = arith.select %16, %14, %18 : vector<128x128xi1>, vector<128x128xf32>
    %cst_13 = arith.constant -1.000000e+30 : f32
    %20 = vector.broadcast %cst_13 : f32 to vector<128x128xf32>
    %21 = arith.select %2, %19, %20 : vector<128x128xi1>, vector<128x128xf32>
    %cst_14 = arith.constant dense<0xFF800000> : vector<128xf32>
    %22 = vector.multi_reduction <maximumf>, %21, %cst_14 [1] : vector<128x128xf32> to vector<128xf32>
    %23 = vector.shape_cast %22 : vector<128xf32> to vector<128x1xf32>
    %24 = vector.broadcast %23 : vector<128x1xf32> to vector<128x128xf32>
    %25 = arith.subf %21, %24 : vector<128x128xf32>
    %26 = math.exp %25 : vector<128x128xf32>
    %cst_15 = arith.constant dense<0.000000e+00> : vector<128xf32>
    %27 = vector.multi_reduction <add>, %26, %cst_15 [1] : vector<128x128xf32> to vector<128xf32>
    %28 = vector.shape_cast %27 : vector<128xf32> to vector<128x1xf32>
    %29 = arith.truncf %26 : vector<128x128xf32> to vector<128x128xbf16>
    %30 = arith.truncf %7 : vector<128x128xf32> to vector<128x128xbf16>
    %cst_16 = arith.constant dense<0.000000e+00> : vector<128x128xf32>
    %31 = tpu.matmul %29, %30, %cst_16 {dimension_numbers = #tpu.dot_dimension_numbers<[1], [0], [0], [1], [0, 0, 1, 1], [], []>} : vector<128x128xbf16>, vector<128x128xbf16>, vector<128x128xf32> -> vector<128x128xf32>
    %32 = tpu.reciprocal %28 {approx = true} : vector<128x1xf32> -> vector<128x1xf32>
    %33 = vector.broadcast %32 : vector<128x1xf32> to vector<128x128xf32>
    %34 = arith.mulf %31, %33 : vector<128x128xf32>
    %c0_17 = arith.constant 0 : index
    %c0_18 = arith.constant 0 : index
    %35 = vector.load %arg4[%c0_17, %c0_18] : memref<1x128xf32, #tpu.memory_space<vmem>>, vector<1x128xf32>
    %36 = vector.broadcast %35 : vector<1x128xf32> to vector<128x128xf32>
    %37 = arith.addf %34, %36 : vector<128x128xf32>
    %cst_19 = arith.constant 0.000000e+00 : f32
    %38 = vector.broadcast %cst_19 : f32 to vector<128x128xf32>
    %39 = arith.maximumf %37, %38 : vector<128x128xf32>
    %c0_20 = arith.constant 0 : index
    %c0_21 = arith.constant 0 : index
    %40 = vector.load %arg7[%c0_20, %c0_21] : memref<1x128xf32, #tpu.memory_space<vmem>>, vector<1x128xf32>
    %41 = vector.broadcast %40 : vector<1x128xf32> to vector<128x128xf32>
    %42 = arith.mulf %39, %41 : vector<128x128xf32>
    %c0_22 = arith.constant 0 : index
    %c0_23 = arith.constant 0 : index
    %43 = vector.load %arg8[%c0_22, %c0_23] : memref<1x128xf32, #tpu.memory_space<vmem>>, vector<1x128xf32>
    %44 = vector.broadcast %43 : vector<1x128xf32> to vector<128x128xf32>
    %45 = arith.addf %42, %44 : vector<128x128xf32>
    %46 = arith.truncf %45 : vector<128x128xf32> to vector<128x128xbf16>
    %c0_24 = arith.constant 0 : index
    %c0_25 = arith.constant 0 : index
    %47 = vector.load %arg9[%c0_24, %c0_25] : memref<128x128xf32, #tpu.memory_space<vmem>>, vector<128x128xf32>
    %48 = arith.truncf %47 : vector<128x128xf32> to vector<128x128xbf16>
    %cst_26 = arith.constant dense<0.000000e+00> : vector<128x128xf32>
    %49 = tpu.matmul %46, %48, %cst_26 {dimension_numbers = #tpu.dot_dimension_numbers<[1], [0], [0], [1], [0, 0, 1, 1], [], []>} : vector<128x128xbf16>, vector<128x128xbf16>, vector<128x128xf32> -> vector<128x128xf32>
    %c0_27 = arith.constant 0 : index
    %c0_28 = arith.constant 0 : index
    %50 = vector.load %arg11[%c0_27, %c0_28] : memref<1x128xf32, #tpu.memory_space<vmem>>, vector<1x128xf32>
    %cst_29 = arith.constant dense<0.000000e+00> : vector<1x128xf32>
    %51 = tpu.matmul %50, %49, %cst_29 {dimension_numbers = #tpu.dot_dimension_numbers<[1], [1], [0], [0], [0, 0, 1, 0], [], []>} : vector<1x128xf32>, vector<128x128xf32>, vector<1x128xf32> -> vector<1x128xf32>
    %c0_30 = arith.constant 0 : index
    %c0_31 = arith.constant 0 : index
    %52 = vector.load %arg12[%c0_30, %c0_31] : memref<1x128xf32, #tpu.memory_space<vmem>>, vector<1x128xf32>
    %cst_32 = arith.constant dense<0.000000e+00> : vector<128x1xf32>
    %53 = tpu.matmul %49, %52, %cst_32 {dimension_numbers = #tpu.dot_dimension_numbers<[1], [1], [0], [0], [0, 0, 1, 0], [], []>} : vector<128x128xf32>, vector<1x128xf32>, vector<128x1xf32> -> vector<128x1xf32>
    %54 = vector.broadcast %53 : vector<128x1xf32> to vector<128x128xf32>
    %55 = vector.broadcast %51 : vector<1x128xf32> to vector<128x128xf32>
    %56 = arith.addf %54, %55 : vector<128x128xf32>
    %cst_33 = arith.constant 0.000000e+00 : f32
    %57 = vector.broadcast %cst_33 : f32 to vector<128x128xf32>
    %58 = arith.cmpf ogt, %56, %57 : vector<128x128xf32>
    %cst_34 = arith.constant 2.000000e-01 : f32
    %59 = vector.broadcast %cst_34 : f32 to vector<128x128xf32>
    %60 = arith.mulf %59, %56 : vector<128x128xf32>
    %61 = arith.select %58, %56, %60 : vector<128x128xi1>, vector<128x128xf32>
    %cst_35 = arith.constant -1.000000e+30 : f32
    %62 = vector.broadcast %cst_35 : f32 to vector<128x128xf32>
    %63 = arith.select %2, %61, %62 : vector<128x128xi1>, vector<128x128xf32>
    %cst_36 = arith.constant dense<0xFF800000> : vector<128xf32>
    %64 = vector.multi_reduction <maximumf>, %63, %cst_36 [1] : vector<128x128xf32> to vector<128xf32>
    %65 = vector.shape_cast %64 : vector<128xf32> to vector<128x1xf32>
    %66 = vector.broadcast %65 : vector<128x1xf32> to vector<128x128xf32>
    %67 = arith.subf %63, %66 : vector<128x128xf32>
    %68 = math.exp %67 : vector<128x128xf32>
    %cst_37 = arith.constant dense<0.000000e+00> : vector<128xf32>
    %69 = vector.multi_reduction <add>, %68, %cst_37 [1] : vector<128x128xf32> to vector<128xf32>
    %70 = vector.shape_cast %69 : vector<128xf32> to vector<128x1xf32>
    %71 = arith.truncf %68 : vector<128x128xf32> to vector<128x128xbf16>
    %72 = arith.truncf %49 : vector<128x128xf32> to vector<128x128xbf16>
    %cst_38 = arith.constant dense<0.000000e+00> : vector<128x128xf32>
    %73 = tpu.matmul %71, %72, %cst_38 {dimension_numbers = #tpu.dot_dimension_numbers<[1], [0], [0], [1], [0, 0, 1, 1], [], []>} : vector<128x128xbf16>, vector<128x128xbf16>, vector<128x128xf32> -> vector<128x128xf32>
    %74 = tpu.reciprocal %70 {approx = true} : vector<128x1xf32> -> vector<128x1xf32>
    %75 = vector.broadcast %74 : vector<128x1xf32> to vector<128x128xf32>
    %76 = arith.mulf %73, %75 : vector<128x128xf32>
    %c0_39 = arith.constant 0 : index
    %c0_40 = arith.constant 0 : index
    %77 = vector.load %arg10[%c0_39, %c0_40] : memref<1x128xf32, #tpu.memory_space<vmem>>, vector<1x128xf32>
    %78 = vector.broadcast %77 : vector<1x128xf32> to vector<128x128xf32>
    %79 = arith.addf %76, %78 : vector<128x128xf32>
    %cst_41 = arith.constant 0.000000e+00 : f32
    %80 = vector.broadcast %cst_41 : f32 to vector<128x128xf32>
    %81 = arith.maximumf %79, %80 : vector<128x128xf32>
    %c0_42 = arith.constant 0 : index
    %c0_43 = arith.constant 0 : index
    %82 = vector.load %arg13[%c0_42, %c0_43] : memref<1x128xf32, #tpu.memory_space<vmem>>, vector<1x128xf32>
    %83 = vector.broadcast %82 : vector<1x128xf32> to vector<128x128xf32>
    %84 = arith.mulf %81, %83 : vector<128x128xf32>
    %c0_44 = arith.constant 0 : index
    %c0_45 = arith.constant 0 : index
    %85 = vector.load %arg14[%c0_44, %c0_45] : memref<1x128xf32, #tpu.memory_space<vmem>>, vector<1x128xf32>
    %86 = vector.broadcast %85 : vector<1x128xf32> to vector<128x128xf32>
    %87 = arith.addf %84, %86 : vector<128x128xf32>
    %c0_46 = arith.constant 0 : index
    %c0_47 = arith.constant 0 : index
    %88 = vector.load %arg2[%c0_46, %c0_47] : memref<8x128xf32, #tpu.memory_space<vmem>>, vector<8x128xf32>
    %89 = arith.truncf %88 : vector<8x128xf32> to vector<8x128xbf16>
    %90 = arith.truncf %87 : vector<128x128xf32> to vector<128x128xbf16>
    %cst_48 = arith.constant dense<0.000000e+00> : vector<8x128xf32>
    %91 = tpu.matmul %89, %90, %cst_48 {dimension_numbers = #tpu.dot_dimension_numbers<[1], [0], [0], [1], [0, 0, 1, 1], [], []>} : vector<8x128xbf16>, vector<128x128xbf16>, vector<8x128xf32> -> vector<8x128xf32>
    %c0_49 = arith.constant 0 : index
    %c0_50 = arith.constant 0 : index
    %92 = vector.load %arg15[%c0_49, %c0_50] : memref<128x128xf32, #tpu.memory_space<vmem>>, vector<128x128xf32>
    %cst_51 = arith.constant dense<0.000000e+00> : vector<8x128xf32>
    %93 = tpu.matmul %91, %92, %cst_51 {dimension_numbers = #tpu.dot_dimension_numbers<[1], [0], [0], [1], [0, 0, 1, 1], [], []>} : vector<8x128xf32>, vector<128x128xf32>, vector<8x128xf32> -> vector<8x128xf32>
    %c0_52 = arith.constant 0 : index
    %c0_53 = arith.constant 0 : index
    %94 = vector.load %arg16[%c0_52, %c0_53] : memref<1x128xf32, #tpu.memory_space<vmem>>, vector<1x128xf32>
    %95 = vector.broadcast %94 : vector<1x128xf32> to vector<8x128xf32>
    %96 = arith.addf %93, %95 : vector<8x128xf32>
    %cst_54 = arith.constant 0.000000e+00 : f32
    %97 = vector.broadcast %cst_54 : f32 to vector<8x128xf32>
    %98 = arith.maximumf %96, %97 : vector<8x128xf32>
    %c0_55 = arith.constant 0 : index
    %c0_56 = arith.constant 0 : index
    %99 = vector.load %arg17[%c0_55, %c0_56] : memref<128x128xf32, #tpu.memory_space<vmem>>, vector<128x128xf32>
    %cst_57 = arith.constant dense<0.000000e+00> : vector<8x128xf32>
    %100 = tpu.matmul %98, %99, %cst_57 {dimension_numbers = #tpu.dot_dimension_numbers<[1], [0], [0], [1], [0, 0, 1, 1], [], []>} : vector<8x128xf32>, vector<128x128xf32>, vector<8x128xf32> -> vector<8x128xf32>
    %c0_58 = arith.constant 0 : index
    %c0_59 = arith.constant 0 : index
    %101 = vector.load %arg18[%c0_58, %c0_59] : memref<1x128xf32, #tpu.memory_space<vmem>>, vector<1x128xf32>
    %102 = vector.broadcast %101 : vector<1x128xf32> to vector<8x128xf32>
    %103 = arith.addf %100, %102 : vector<8x128xf32>
    %cst_60 = arith.constant 0.000000e+00 : f32
    %104 = vector.broadcast %cst_60 : f32 to vector<8x128xf32>
    %105 = arith.maximumf %103, %104 : vector<8x128xf32>
    %c0_61 = arith.constant 0 : index
    %c0_62 = arith.constant 0 : index
    %106 = vector.load %arg19[%c0_61, %c0_62] : memref<128x128xf32, #tpu.memory_space<vmem>>, vector<128x128xf32>
    %cst_63 = arith.constant dense<0.000000e+00> : vector<8x128xf32>
    %107 = tpu.matmul %105, %106, %cst_63 {dimension_numbers = #tpu.dot_dimension_numbers<[1], [0], [0], [1], [0, 0, 1, 1], [], []>} : vector<8x128xf32>, vector<128x128xf32>, vector<8x128xf32> -> vector<8x128xf32>
    %c0_64 = arith.constant 0 : index
    %c0_65 = arith.constant 0 : index
    %108 = vector.load %arg20[%c0_64, %c0_65] : memref<1x128xf32, #tpu.memory_space<vmem>>, vector<1x128xf32>
    %109 = vector.broadcast %108 : vector<1x128xf32> to vector<8x128xf32>
    %110 = arith.addf %107, %109 : vector<8x128xf32>
    %cst_66 = arith.constant 0.000000e+00 : f32
    %111 = vector.broadcast %cst_66 : f32 to vector<8x128xf32>
    %112 = arith.maximumf %110, %111 : vector<8x128xf32>
    %c0_67 = arith.constant 0 : index
    %c0_68 = arith.constant 0 : index
    %113 = vector.load %arg21[%c0_67, %c0_68] : memref<128x128xf32, #tpu.memory_space<vmem>>, vector<128x128xf32>
    %cst_69 = arith.constant dense<0.000000e+00> : vector<8x128xf32>
    %114 = tpu.matmul %112, %113, %cst_69 {dimension_numbers = #tpu.dot_dimension_numbers<[1], [0], [0], [1], [0, 0, 1, 1], [], []>} : vector<8x128xf32>, vector<128x128xf32>, vector<8x128xf32> -> vector<8x128xf32>
    %c0_70 = arith.constant 0 : index
    %c0_71 = arith.constant 0 : index
    %115 = vector.load %arg22[%c0_70, %c0_71] : memref<1x128xf32, #tpu.memory_space<vmem>>, vector<1x128xf32>
    %116 = vector.broadcast %115 : vector<1x128xf32> to vector<8x128xf32>
    %117 = arith.addf %114, %116 : vector<8x128xf32>
    %118 = tpu.iota {dimensions = array<i32: 1>} : vector<8x128xi32>
    %c2_i32 = arith.constant 2 : i32
    %119 = vector.broadcast %c2_i32 : i32 to vector<8x128xi32>
    %120 = arith.cmpi slt, %118, %119 : vector<8x128xi32>
    %cst_72 = arith.constant -1.000000e+30 : f32
    %121 = vector.broadcast %cst_72 : f32 to vector<8x128xf32>
    %122 = arith.select %120, %117, %121 : vector<8x128xi1>, vector<8x128xf32>
    %cst_73 = arith.constant dense<0xFF800000> : vector<8xf32>
    %123 = vector.multi_reduction <maximumf>, %122, %cst_73 [1] : vector<8x128xf32> to vector<8xf32>
    %124 = vector.shape_cast %123 : vector<8xf32> to vector<8x1xf32>
    %125 = vector.broadcast %124 : vector<8x1xf32> to vector<8x128xf32>
    %126 = arith.subf %122, %125 : vector<8x128xf32>
    %127 = math.exp %126 : vector<8x128xf32>
    %cst_74 = arith.constant dense<0.000000e+00> : vector<8xf32>
    %128 = vector.multi_reduction <add>, %127, %cst_74 [1] : vector<8x128xf32> to vector<8xf32>
    %129 = vector.shape_cast %128 : vector<8xf32> to vector<8x1xf32>
    %130 = math.log %129 : vector<8x1xf32>
    %131 = vector.broadcast %130 : vector<8x1xf32> to vector<8x128xf32>
    %132 = arith.subf %126, %131 : vector<8x128xf32>
    %c0_75 = arith.constant 0 : index
    %c0_76 = arith.constant 0 : index
    %133 = vector.load %arg23[%c0_75, %c0_76] : memref<8x128xf32, #tpu.memory_space<vmem>>, vector<8x128xf32>
    tpu.vector_store %arg23[%c0_75, %c0_76], %132 {strides = array<i32>} : memref<8x128xf32, #tpu.memory_space<vmem>>, vector<8x128xf32>,
    return
  }
}

</mosaic_0001>

<llo_original>
// kernel: gat_model_forward.1
$region0: #{gat_model_forward.1}
  #allocation0 [shape = 'u32[]', space=smem, size = 0x4, offset = 0x4, fixed_abs, tag = 'smem constant byte address 0x4 - core index']
  #allocation1 [shape = 'u32[144,128]{1,0:T(1,128)}', space=vmem, size = 0x12000, scoped, tag = 'internal scratch']
  %s0 = inlined_call_operand.vmem [shape: f32[128,128], index: 0, kind: input, shape index: {}]
  %s1 = inlined_call_operand.hbm [shape: s8[128,128], index: 1, kind: input, shape index: {}]
  %s2 = inlined_call_operand.hbm [shape: f32[8,128], index: 2, kind: input, shape index: {}]
  %s3 = inlined_call_operand.vmem [shape: f32[128,128], index: 3, kind: input, shape index: {}]
  %s4 = inlined_call_operand.vmem [shape: f32[1,128], index: 4, kind: input, shape index: {}]
  %s5 = inlined_call_operand.vmem [shape: f32[1,128], index: 5, kind: input, shape index: {}]
  %s6 = inlined_call_operand.vmem [shape: f32[1,128], index: 6, kind: input, shape index: {}]
  %s7 = inlined_call_operand.vmem [shape: f32[1,128], index: 7, kind: input, shape index: {}]
  %s8 = inlined_call_operand.vmem [shape: f32[1,128], index: 8, kind: input, shape index: {}]
  %s9 = inlined_call_operand.vmem [shape: f32[128,128], index: 9, kind: input, shape index: {}]
  %s10 = inlined_call_operand.vmem [shape: f32[1,128], index: 10, kind: input, shape index: {}]
  %s11 = inlined_call_operand.hbm [shape: f32[1,128], index: 11, kind: input, shape index: {}]
  %s12 = inlined_call_operand.hbm [shape: f32[1,128], index: 12, kind: input, shape index: {}]
  %s13 = inlined_call_operand.vmem [shape: f32[1,128], index: 13, kind: input, shape index: {}]
  %s14 = inlined_call_operand.vmem [shape: f32[1,128], index: 14, kind: input, shape index: {}]
  %s15 = inlined_call_operand.hbm [shape: f32[128,128], index: 15, kind: input, shape index: {}]
  %s16 = inlined_call_operand.vmem [shape: f32[1,128], index: 16, kind: input, shape index: {}]
  %s17 = inlined_call_operand.hbm [shape: f32[128,128], index: 17, kind: input, shape index: {}]
  %s18 = inlined_call_operand.vmem [shape: f32[1,128], index: 18, kind: input, shape index: {}]
  %s19 = inlined_call_operand.hbm [shape: f32[128,128], index: 19, kind: input, shape index: {}]
  %s20 = inlined_call_operand.vmem [shape: f32[1,128], index: 20, kind: input, shape index: {}]
  %s21 = inlined_call_operand.hbm [shape: f32[128,128], index: 21, kind: input, shape index: {}]
  %s22 = inlined_call_operand.vmem [shape: f32[1,128], index: 22, kind: input, shape index: {}]
  %s23 = inlined_call_operand.vmem [shape: f32[8,128], index: 23, kind: output, shape index: {}]
  %s24 = sld [smem:[#allocation0]]
  $region134: #{gat_model_forward.1} parent=0
    _
  %s26 = ssub.s32 1, %s24
  %s27 = scalar_select 0, %s26, %s24
  $region1: #{gat_model_forward.1} parent=0
    #allocation2 [shape = 'u8[16384]{0}', space=vmem, size = 0x4000, scoped, tag = 'input window, operand 1, single buffered']
    #allocation3 [shape = 's32[1]{0}', space=sflag, size = 0x4, scoped, tag = 'scoped memory for gat_model_forward.1']
    #allocation4 [shape = 'u8[4096]{0}', space=vmem, size = 0x1000, scoped, tag = 'input window, operand 2, single buffered']
    #allocation5 [shape = 's32[1]{0}', space=sflag, size = 0x4, scoped, tag = 'scoped memory for gat_model_forward.1']
    #allocation6 [shape = 'u8[512]{0}', space=vmem, size = 0x400, scoped, tag = 'input window, operand 11, single buffered']
    #allocation7 [shape = 'u8[512]{0}', space=vmem, size = 0x400, scoped, tag = 'input window, operand 12, single buffered']
    #allocation8 [shape = 's32[1]{0}', space=sflag, size = 0x4, scoped, tag = 'scoped memory for gat_model_forward.1']
    #allocation9 [shape = 'u8[65536]{0}', space=vmem, size = 0x10000, scoped, tag = 'input window, operand 15, single buffered']
    #allocation10 [shape = 'u8[65536]{0}', space=vmem, size = 0x10000, scoped, tag = 'input window, operand 17, single buffered']
    #allocation11 [shape = 's32[1]{0}', space=sflag, size = 0x4, scoped, tag = 'scoped memory for gat_model_forward.1']
    #allocation12 [shape = 'u8[65536]{0}', space=vmem, size = 0x10000, scoped, tag = 'input window, operand 19, single buffered']
    #allocation13 [shape = 'u8[65536]{0}', space=vmem, size = 0x10000, scoped, tag = 'input window, operand 21, single buffered']
    #allocation14 [shape = 's32[1]{0}', space=sflag, size = 0x4, scoped, tag = 'scoped memory for gat_model_forward.1']
    %28 = vsyncpa [#allocation3], 0
    %29 = vsyncpa [#allocation5], 0
    %30 = vsyncpa [#allocation8], 0
    %31 = vsyncpa [#allocation11], 0
    %32 = vsyncpa [#allocation14], 0
    // Predicated region
    $region2: #{gat_model_forward.1} parent=1 // pred_check
      _
    $region3: #{gat_model_forward.1} parent=1 // pred_check_branch
      %34 = sbr.rel (0) target = $region5
    $region4: #{gat_model_forward.1} parent=1 // pred_region
      _
    $region5: #{gat_model_forward.1} parent=1 // pred_fallthru
      _
    // Predicated region
    $region6: #{gat_model_forward.1} parent=1 // pred_check
      _
    $region7: #{gat_model_forward.1} parent=1 // pred_check_branch
      %36 = sbr.rel (0) target = $region9
    $region8: #{gat_model_forward.1} parent=1 // pred_region
      %s38 = ssub.s32 512, 512
      %39 = vsyncadd [#allocation3], %s38
      %s40 = sshll.u32 [#allocation2], 4
      %s41 = int_to_ptr.vmem [resolvable:$true] %s40
      %46 = dma.hbm_to_vmem [thread:$0]  %s1, 512, %s41, [#allocation3], 128, 128, 8
    $region9: #{gat_model_forward.1} parent=1 // pred_fallthru
      _
    // Predicated region
    $region10: #{gat_model_forward.1} parent=1 // pred_check
      _
    $region11: #{gat_model_forward.1} parent=1 // pred_check_branch
      %48 = sbr.rel (0) target = $region13
    $region12: #{gat_model_forward.1} parent=1 // pred_region
      %s50 = ssub.s32 128, 128
      %51 = vsyncadd [#allocation5], %s50
      %s53 = sshll.u32 [#allocation4], 4
      %s54 = int_to_ptr.vmem [resolvable:$true] %s53
      %56 = dma.hbm_to_vmem [thread:$0]  %s2, 128, %s54, [#allocation5]
    $region13: #{gat_model_forward.1} parent=1 // pred_fallthru
      _
    // Predicated region
    $region14: #{gat_model_forward.1} parent=1 // pred_check
      _
    $region15: #{gat_model_forward.1} parent=1 // pred_check_branch
      %58 = sbr.rel (0) target = $region17
    $region16: #{gat_model_forward.1} parent=1 // pred_region
      _
    $region17: #{gat_model_forward.1} parent=1 // pred_fallthru
      _
    // Predicated region
    $region18: #{gat_model_forward.1} parent=1 // pred_check
      _
    $region19: #{gat_model_forward.1} parent=1 // pred_check_branch
      %60 = sbr.rel (0) target = $region21
    $region20: #{gat_model_forward.1} parent=1 // pred_region
      _
    $region21: #{gat_model_forward.1} parent=1 // pred_fallthru
      _
    // Predicated region
    $region22: #{gat_model_forward.1} parent=1 // pred_check
      _
    $region23: #{gat_model_forward.1} parent=1 // pred_check_branch
      %62 = sbr.rel (0) target = $region25
    $region24: #{gat_model_forward.1} parent=1 // pred_region
      _
    $region25: #{gat_model_forward.1} parent=1 // pred_fallthru
      _
    // Predicated region
    $region26: #{gat_model_forward.1} parent=1 // pred_check
      _
    $region27: #{gat_model_forward.1} parent=1 // pred_check_branch
      %64 = sbr.rel (0) target = $region29
    $region28: #{gat_model_forward.1} parent=1 // pred_region
      _
    $region29: #{gat_model_forward.1} parent=1 // pred_fallthru
      _
    // Predicated region
    $region30: #{gat_model_forward.1} parent=1 // pred_check
      _
    $region31: #{gat_model_forward.1} parent=1 // pred_check_branch
      %66 = sbr.rel (0) target = $region33
    $region32: #{gat_model_forward.1} parent=1 // pred_region
      _
    $region33: #{gat_model_forward.1} parent=1 // pred_fallthru
      _
    // Predicated region
    $region34: #{gat_model_forward.1} parent=1 // pred_check
      _
    $region35: #{gat_model_forward.1} parent=1 // pred_check_branch
      %68 = sbr.rel (0) target = $region37
    $region36: #{gat_model_forward.1} parent=1 // pred_region
      _
    $region37: #{gat_model_forward.1} parent=1 // pred_fallthru
      _
    // Predicated region
    $region38: #{gat_model_forward.1} parent=1 // pred_check
      _
    $region39: #{gat_model_forward.1} parent=1 // pred_check_branch
      %70 = sbr.rel (0) target = $region41
    $region40: #{gat_model_forward.1} parent=1 // pred_region
      _
    $region41: #{gat_model_forward.1} parent=1 // pred_fallthru
      _
    // Predicated region
    $region42: #{gat_model_forward.1} parent=1 // pred_check
      _
    $region43: #{gat_model_forward.1} parent=1 // pred_check_branch
      %72 = sbr.rel (0) target = $region45
    $region44: #{gat_model_forward.1} parent=1 // pred_region
      _
    $region45: #{gat_model_forward.1} parent=1 // pred_fallthru
      _
    // Predicated region
    $region46: #{gat_model_forward.1} parent=1 // pred_check
      _
    $region47: #{gat_model_forward.1} parent=1 // pred_check_branch
      %74 = sbr.rel (0) target = $region49
    $region48: #{gat_model_forward.1} parent=1 // pred_region
      %s76 = ssub.s32 16, 16
      %77 = vsyncadd [#allocation5], %s76
      %s79 = sshll.u32 [#allocation6], 4
      %s80 = int_to_ptr.vmem [resolvable:$true] %s79
      %82 = dma.hbm_to_vmem [thread:$0]  %s11, 16, %s80, [#allocation5]
    $region49: #{gat_model_forward.1} parent=1 // pred_fallthru
      _
    // Predicated region
    $region50: #{gat_model_forward.1} parent=1 // pred_check
      _
    $region51: #{gat_model_forward.1} parent=1 // pred_check_branch
      %84 = sbr.rel (0) target = $region53
    $region52: #{gat_model_forward.1} parent=1 // pred_region
      %s86 = ssub.s32 16, 16
      %87 = vsyncadd [#allocation8], %s86
      %s89 = sshll.u32 [#allocation7], 4
      %s90 = int_to_ptr.vmem [resolvable:$true] %s89
      %92 = dma.hbm_to_vmem [thread:$0]  %s12, 16, %s90, [#allocation8]
    $region53: #{gat_model_forward.1} parent=1 // pred_fallthru
      _
    // Predicated region
    $region54: #{gat_model_forward.1} parent=1 // pred_check
      _
    $region55: #{gat_model_forward.1} parent=1 // pred_check_branch
      %94 = sbr.rel (0) target = $region57
    $region56: #{gat_model_forward.1} parent=1 // pred_region
      _
    $region57: #{gat_model_forward.1} parent=1 // pred_fallthru
      _
    // Predicated region
    $region58: #{gat_model_forward.1} parent=1 // pred_check
      _
    $region59: #{gat_model_forward.1} parent=1 // pred_check_branch
      %96 = sbr.rel (0) target = $region61
    $region60: #{gat_model_forward.1} parent=1 // pred_region
      _
    $region61: #{gat_model_forward.1} parent=1 // pred_fallthru
      _
    // Predicated region
    $region62: #{gat_model_forward.1} parent=1 // pred_check
      _
    $region63: #{gat_model_forward.1} parent=1 // pred_check_branch
      %98 = sbr.rel (0) target = $region65
    $region64: #{gat_model_forward.1} parent=1 // pred_region
      %s100 = ssub.s32 2048, 2048
      %101 = vsyncadd [#allocation8], %s100
      %s102 = sshll.u32 [#allocation9], 4
      %s103 = int_to_ptr.vmem [resolvable:$true] %s102
      %108 = dma.hbm_to_vmem [thread:$0]  %s15, 2048, %s103, [#allocation8], 128, 128, 8
    $region65: #{gat_model_forward.1} parent=1 // pred_fallthru
      _
    // Predicated region
    $region66: #{gat_model_forward.1} parent=1 // pred_check
      _
    $region67: #{gat_model_forward.1} parent=1 // pred_check_branch
      %110 = sbr.rel (0) target = $region69
    $region68: #{gat_model_forward.1} parent=1 // pred_region
      _
    $region69: #{gat_model_forward.1} parent=1 // pred_fallthru
      _
    // Predicated region
    $region70: #{gat_model_forward.1} parent=1 // pred_check
      _
    $region71: #{gat_model_forward.1} parent=1 // pred_check_branch
      %112 = sbr.rel (0) target = $region73
    $region72: #{gat_model_forward.1} parent=1 // pred_region
      %s114 = ssub.s32 2048, 2048
      %115 = vsyncadd [#allocation11], %s114
      %s116 = sshll.u32 [#allocation10], 4
      %s117 = int_to_ptr.vmem [resolvable:$true] %s116
      %122 = dma.hbm_to_vmem [thread:$0]  %s17, 2048, %s117, [#allocation11], 128, 128, 8
    $region73: #{gat_model_forward.1} parent=1 // pred_fallthru
      _
    // Predicated region
    $region74: #{gat_model_forward.1} parent=1 // pred_check
      _
    $region75: #{gat_model_forward.1} parent=1 // pred_check_branch
      %124 = sbr.rel (0) target = $region77
    $region76: #{gat_model_forward.1} parent=1 // pred_region
      _
    $region77: #{gat_model_forward.1} parent=1 // pred_fallthru
      _
    // Predicated region
    $region78: #{gat_model_forward.1} parent=1 // pred_check
      _
    $region79: #{gat_model_forward.1} parent=1 // pred_check_branch
      %126 = sbr.rel (0) target = $region81
    $region80: #{gat_model_forward.1} parent=1 // pred_region
      %s128 = ssub.s32 2048, 2048
      %129 = vsyncadd [#allocation11], %s128
      %s130 = sshll.u32 [#allocation12], 4
      %s131 = int_to_ptr.vmem [resolvable:$true] %s130
      %136 = dma.hbm_to_vmem [thread:$0]  %s19, 2048, %s131, [#allocation11], 128, 128, 8
    $region81: #{gat_model_forward.1} parent=1 // pred_fallthru
      _
    // Predicated region
    $region82: #{gat_model_forward.1} parent=1 // pred_check
      _
    $region83: #{gat_model_forward.1} parent=1 // pred_check_branch
      %138 = sbr.rel (0) target = $region85
    $region84: #{gat_model_forward.1} parent=1 // pred_region
      _
    $region85: #{gat_model_forward.1} parent=1 // pred_fallthru
      _
    // Predicated region
    $region86: #{gat_model_forward.1} parent=1 // pred_check
      _
    $region87: #{gat_model_forward.1} parent=1 // pred_check_branch
      %140 = sbr.rel (0) target = $region89
    $region88: #{gat_model_forward.1} parent=1 // pred_region
      %s142 = ssub.s32 2048, 2048
      %143 = vsyncadd [#allocation14], %s142
      %s144 = sshll.u32 [#allocation13], 4
      %s145 = int_to_ptr.vmem [resolvable:$true] %s144
      %150 = dma.hbm_to_vmem [thread:$0]  %s21, 2048, %s145, [#allocation14], 128, 128, 8
    $region89: #{gat_model_forward.1} parent=1 // pred_fallthru
      _
    // Predicated region
    $region90: #{gat_model_forward.1} parent=1 // pred_check
      _
    $region91: #{gat_model_forward.1} parent=1 // pred_check_branch
      %152 = sbr.rel (0) target = $region93
    $region92: #{gat_model_forward.1} parent=1 // pred_region
      _
    $region93: #{gat_model_forward.1} parent=1 // pred_fallthru
      _
    // Predicated region
    $region94: #{gat_model_forward.1} parent=1 // pred_check
      _
    $region95: #{gat_model_forward.1} parent=1 // pred_check_branch
      %154 = sbr.rel (0) target = $region97
    $region96: #{gat_model_forward.1} parent=1 // pred_region
      %155 = dma.done [#allocation3], 512
    $region97: #{gat_model_forward.1} parent=1 // pred_fallthru
      _
    // Predicated region
    $region98: #{gat_model_forward.1} parent=1 // pred_check
      _
    $region99: #{gat_model_forward.1} parent=1 // pred_check_branch
      %157 = sbr.rel (0) target = $region101
    $region100: #{gat_model_forward.1} parent=1 // pred_region
      %158 = dma.done [#allocation5], 128
    $region101: #{gat_model_forward.1} parent=1 // pred_fallthru
      _
    // Predicated region
    $region102: #{gat_model_forward.1} parent=1 // pred_check
      _
    $region103: #{gat_model_forward.1} parent=1 // pred_check_branch
      %160 = sbr.rel (0) target = $region105
    $region104: #{gat_model_forward.1} parent=1 // pred_region
      %161 = dma.done [#allocation5], 16
    $region105: #{gat_model_forward.1} parent=1 // pred_fallthru
      _
    // Predicated region
    $region106: #{gat_model_forward.1} parent=1 // pred_check
      _
    $region107: #{gat_model_forward.1} parent=1 // pred_check_branch
      %163 = sbr.rel (0) target = $region109
    $region108: #{gat_model_forward.1} parent=1 // pred_region
      %164 = dma.done [#allocation8], 16
    $region109: #{gat_model_forward.1} parent=1 // pred_fallthru
      _
    // Predicated region
    $region110: #{gat_model_forward.1} parent=1 // pred_check
      _
    $region111: #{gat_model_forward.1} parent=1 // pred_check_branch
      %166 = sbr.rel (0) target = $region113
    $region112: #{gat_model_forward.1} parent=1 // pred_region
      %167 = dma.done [#allocation8], 2048
    $region113: #{gat_model_forward.1} parent=1 // pred_fallthru
      _
    // Predicated region
    $region114: #{gat_model_forward.1} parent=1 // pred_check
      _
    $region115: #{gat_model_forward.1} parent=1 // pred_check_branch
      %169 = sbr.rel (0) target = $region117
    $region116: #{gat_model_forward.1} parent=1 // pred_region
      %170 = dma.done [#allocation11], 2048
    $region117: #{gat_model_forward.1} parent=1 // pred_fallthru
      _
    // Predicated region
    $region118: #{gat_model_forward.1} parent=1 // pred_check
      _
    $region119: #{gat_model_forward.1} parent=1 // pred_check_branch
      %172 = sbr.rel (0) target = $region121
    $region120: #{gat_model_forward.1} parent=1 // pred_region
      %173 = dma.done [#allocation11], 2048
    $region121: #{gat_model_forward.1} parent=1 // pred_fallthru
      _
    // Predicated region
    $region122: #{gat_model_forward.1} parent=1 // pred_check
      _
    $region123: #{gat_model_forward.1} parent=1 // pred_check_branch
      %175 = sbr.rel (0) target = $region125
    $region124: #{gat_model_forward.1} parent=1 // pred_region
      %176 = dma.done [#allocation14], 2048
    $region125: #{gat_model_forward.1} parent=1 // pred_fallthru
      _
    %v180 = vld [vmem:[#allocation2] sm:$0xff]
    %v181 = vld [vmem:[#allocation2 + $0x8] sm:$0xff]
    %v182 = vld [vmem:[#allocation2 + $0x10] sm:$0xff]
    %v183 = vld [vmem:[#allocation2 + $0x18] sm:$0xff]
    %vm184 = vnez %v180
    %vm185 = vnez %v181
    %vm186 = vnez %v182
    %vm187 = vnez %v183
    %v188 = vld [vmem:[%s0] sm:$0xff]
    %v189 = vld [vmem:[%s0 + $0x8] sm:$0xff]
    %v190 = vld [vmem:[%s0 + $0x10] sm:$0xff]
    %v191 = vld [vmem:[%s0 + $0x18] sm:$0xff]
    %v192 = vld [vmem:[%s0 + $0x20] sm:$0xff]
    %v193 = vld [vmem:[%s0 + $0x28] sm:$0xff]
    %v194 = vld [vmem:[%s0 + $0x30] sm:$0xff]
    %v195 = vld [vmem:[%s0 + $0x38] sm:$0xff]
    %v196 = vld [vmem:[%s0 + $0x40] sm:$0xff]
    %v197 = vld [vmem:[%s0 + $0x48] sm:$0xff]
    %v198 = vld [vmem:[%s0 + $0x50] sm:$0xff]
    %v199 = vld [vmem:[%s0 + $0x58] sm:$0xff]
    %v200 = vld [vmem:[%s0 + $0x60] sm:$0xff]
    %v201 = vld [vmem:[%s0 + $0x68] sm:$0xff]
    %v202 = vld [vmem:[%s0 + $0x70] sm:$0xff]
    %v203 = vld [vmem:[%s0 + $0x78] sm:$0xff]
    %v204 = vpack.c.bf16 %v189, %v188
    %v205 = vpack.c.bf16 %v191, %v190
    %v206 = vpack.c.bf16 %v193, %v192
    %v207 = vpack.c.bf16 %v195, %v194
    %v208 = vpack.c.bf16 %v197, %v196
    %v209 = vpack.c.bf16 %v199, %v198
    %v210 = vpack.c.bf16 %v201, %v200
    %v211 = vpack.c.bf16 %v203, %v202
    %v212 = vld [vmem:[%s3] sm:$0xff]
    %v213 = vld [vmem:[%s3 + $0x8] sm:$0xff]
    %v214 = vld [vmem:[%s3 + $0x10] sm:$0xff]
    %v215 = vld [vmem:[%s3 + $0x18] sm:$0xff]
    %v216 = vld [vmem:[%s3 + $0x20] sm:$0xff]
    %v217 = vld [vmem:[%s3 + $0x28] sm:$0xff]
    %v218 = vld [vmem:[%s3 + $0x30] sm:$0xff]
    %v219 = vld [vmem:[%s3 + $0x38] sm:$0xff]
    %v220 = vld [vmem:[%s3 + $0x40] sm:$0xff]
    %v221 = vld [vmem:[%s3 + $0x48] sm:$0xff]
    %v222 = vld [vmem:[%s3 + $0x50] sm:$0xff]
    %v223 = vld [vmem:[%s3 + $0x58] sm:$0xff]
    %v224 = vld [vmem:[%s3 + $0x60] sm:$0xff]
    %v225 = vld [vmem:[%s3 + $0x68] sm:$0xff]
    %v226 = vld [vmem:[%s3 + $0x70] sm:$0xff]
    %v227 = vld [vmem:[%s3 + $0x78] sm:$0xff]
    %v228 = vpack.c.bf16 %v213, %v212
    %v229 = vpack.c.bf16 %v215, %v214
    %v230 = vpack.c.bf16 %v217, %v216
    %v231 = vpack.c.bf16 %v219, %v218
    %v232 = vpack.c.bf16 %v221, %v220
    %v233 = vpack.c.bf16 %v223, %v222
    %v234 = vpack.c.bf16 %v225, %v224
    %v235 = vpack.c.bf16 %v227, %v226
    %236 = vmatprep.subr.bf16.mxu0 0
    %237 = vmatpush1.bf16.msra.mxu0 %v228
    %238 = vmatprep.subr.bf16.mxu0 0
    %239 = vmatpush1.bf16.msra.mxu0 %v229
    %240 = vmatprep.subr.bf16.mxu0 0
    %241 = vmatpush1.bf16.msra.mxu0 %v230
    %242 = vmatprep.subr.bf16.mxu0 0
    %243 = vmatpush1.bf16.msra.mxu0 %v231
    %244 = vmatprep.subr.bf16.mxu0 0
    %245 = vmatpush1.bf16.msra.mxu0 %v232
    %246 = vmatprep.subr.bf16.mxu0 0
    %247 = vmatpush1.bf16.msra.mxu0 %v233
    %248 = vmatprep.subr.bf16.mxu0 0
    %249 = vmatpush1.bf16.msra.mxu0 %v234
    %250 = vmatprep.subr.bf16.mxu0 0
    %251 = vmatpush1.bf16.msra.mxu0 %v235
    %252 = vmatprep.subr.bf16.mxu0 0
    %253 = vmatpush1.bf16.msra.mxu0 0
    %254 = vmatprep.subr.bf16.mxu0 0
    %255 = vmatpush1.bf16.msra.mxu0 0
    %256 = vmatprep.subr.bf16.mxu0 0
    %257 = vmatpush1.bf16.msra.mxu0 0
    %258 = vmatprep.subr.bf16.mxu0 0
    %259 = vmatpush1.bf16.msra.mxu0 0
    %260 = vmatprep.subr.bf16.mxu0 0
    %261 = vmatpush1.bf16.msra.mxu0 0
    %262 = vmatprep.subr.bf16.mxu0 0
    %263 = vmatpush1.bf16.msra.mxu0 0
    %264 = vmatprep.subr.bf16.mxu0 0
    %265 = vmatpush1.bf16.msra.mxu0 0
    %266 = vmatprep.subr.bf16.mxu0 0
    %267 = vmatpush1.bf16.msra.mxu0 0
    %268 = vmatprep.mubr.bf16.mxu0 0
    %269 = vmatmul.mubr.bf16.gmra.mrb[0].mxu0 %v204
    %v270 = vpop.f32.mrb[0].mxu0
    %v271 = vadd.f32 0.0, %v270
    %v272 = vpop.f32.mrb[0].mxu0
    %v273 = vpop.f32.mrb[0].mxu0
    %v274 = vadd.f32 0.0, %v273
    %v275 = vpop.f32.mrb[0].mxu0
    %276 = vmatprep.mubr.bf16.mxu0 0
    %277 = vmatmul.mubr.bf16.gmra.mrb[0].mxu0 %v205
    %v278 = vpop.f32.mrb[0].mxu0
    %v279 = vadd.f32 0.0, %v278
    %v280 = vpop.f32.mrb[0].mxu0
    %v281 = vpop.f32.mrb[0].mxu0
    %v282 = vadd.f32 0.0, %v281
    %v283 = vpop.f32.mrb[0].mxu0
    %284 = vmatprep.mubr.bf16.mxu0 0
    %285 = vmatmul.mubr.bf16.gmra.mrb[0].mxu0 %v206
    %v286 = vpop.f32.mrb[0].mxu0
    %v287 = vadd.f32 0.0, %v286
    %v288 = vpop.f32.mrb[0].mxu0
    %v289 = vpop.f32.mrb[0].mxu0
    %v290 = vadd.f32 0.0, %v289
    %v291 = vpop.f32.mrb[0].mxu0
    %292 = vmatprep.mubr.bf16.mxu0 0
    %293 = vmatmul.mubr.bf16.gmra.mrb[0].mxu0 %v207
    %v294 = vpop.f32.mrb[0].mxu0
    %v295 = vadd.f32 0.0, %v294
    %v296 = vpop.f32.mrb[0].mxu0
    %v297 = vpop.f32.mrb[0].mxu0
    %v298 = vadd.f32 0.0, %v297
    %v299 = vpop.f32.mrb[0].mxu0
    %300 = vmatprep.mubr.bf16.mxu0 0
    %301 = vmatmul.mubr.bf16.gmra.mrb[0].mxu0 %v208
    %v302 = vpop.f32.mrb[0].mxu0
    %v303 = vadd.f32 0.0, %v302
    %v304 = vpop.f32.mrb[0].mxu0
    %v305 = vpop.f32.mrb[0].mxu0
    %v306 = vadd.f32 0.0, %v305
    %v307 = vpop.f32.mrb[0].mxu0
    %308 = vmatprep.mubr.bf16.mxu0 0
    %309 = vmatmul.mubr.bf16.gmra.mrb[0].mxu0 %v209
    %v310 = vpop.f32.mrb[0].mxu0
    %v311 = vadd.f32 0.0, %v310
    %v312 = vpop.f32.mrb[0].mxu0
    %v313 = vpop.f32.mrb[0].mxu0
    %v314 = vadd.f32 0.0, %v313
    %v315 = vpop.f32.mrb[0].mxu0
    %316 = vmatprep.mubr.bf16.mxu0 0
    %317 = vmatmul.mubr.bf16.gmra.mrb[0].mxu0 %v210
    %v318 = vpop.f32.mrb[0].mxu0
    %v319 = vadd.f32 0.0, %v318
    %v320 = vpop.f32.mrb[0].mxu0
    %v321 = vpop.f32.mrb[0].mxu0
    %v322 = vadd.f32 0.0, %v321
    %v323 = vpop.f32.mrb[0].mxu0
    %324 = vmatprep.mubr.bf16.mxu0 0
    %325 = vmatmul.mubr.bf16.gmra.mrb[0].mxu0 %v211
    %v326 = vpop.f32.mrb[0].mxu0
    %v327 = vadd.f32 0.0, %v326
    %v328 = vpop.f32.mrb[0].mxu0
    %v329 = vpop.f32.mrb[0].mxu0
    %v330 = vadd.f32 0.0, %v329
    %v331 = vpop.f32.mrb[0].mxu0
    %332 = vdwg.mxu0
    %v333 = vld [vmem:[%s5] sm:$0x1]
    %334 = vmatprep.subr.mxu0 0.0
    %335 = vmatpush1.xpose.msra.mxu0 %v271
    %336 = vmatprep.subr.mxu0 0.0
    %337 = vmatpush1.xpose.msra.mxu0 %v274
    %338 = vmatprep.subr.mxu0 0.0
    %339 = vmatpush1.xpose.msra.mxu0 %v279
    %340 = vmatprep.subr.mxu0 0.0
    %341 = vmatpush1.xpose.msra.mxu0 %v282
    %342 = vmatprep.subr.mxu0 0.0
    %343 = vmatpush1.xpose.msra.mxu0 %v287
    %344 = vmatprep.subr.mxu0 0.0
    %345 = vmatpush1.xpose.msra.mxu0 %v290
    %346 = vmatprep.subr.mxu0 0.0
    %347 = vmatpush1.xpose.msra.mxu0 %v295
    %348 = vmatprep.subr.mxu0 0.0
    %349 = vmatpush1.xpose.msra.mxu0 %v298
    %350 = vmatprep.subr.mxu0 0.0
    %351 = vmatpush1.xpose.msra.mxu0 %v303
    %352 = vmatprep.subr.mxu0 0.0
    %353 = vmatpush1.xpose.msra.mxu0 %v306
    %354 = vmatprep.subr.mxu0 0.0
    %355 = vmatpush1.xpose.msra.mxu0 %v311
    %356 = vmatprep.subr.mxu0 0.0
    %357 = vmatpush1.xpose.msra.mxu0 %v314
    %358 = vmatprep.subr.mxu0 0.0
    %359 = vmatpush1.xpose.msra.mxu0 %v319
    %360 = vmatprep.subr.mxu0 0.0
    %361 = vmatpush1.xpose.msra.mxu0 %v322
    %362 = vmatprep.subr.mxu0 0.0
    %363 = vmatpush1.xpose.msra.mxu0 %v327
    %364 = vmatprep.subr.mxu0 0.0
    %365 = vmatpush1.xpose.msra.mxu0 %v330
    %366 = vmatprep.subr.mxu0 0.0
    %367 = vmatpush1.xpose.msra.mxu0 0.0
    %368 = vmatprep.subr.mxu0 0.0
    %369 = vmatpush1.xpose.msra.mxu0 0.0
    %370 = vmatprep.subr.mxu0 0.0
    %371 = vmatpush1.xpose.msra.mxu0 0.0
    %372 = vmatprep.subr.mxu0 0.0
    %373 = vmatpush1.xpose.msra.mxu0 0.0
    %374 = vmatprep.subr.mxu0 0.0
    %375 = vmatpush1.xpose.msra.mxu0 0.0
    %376 = vmatprep.subr.mxu0 0.0
    %377 = vmatpush1.xpose.msra.mxu0 0.0
    %378 = vmatprep.subr.mxu0 0.0
    %379 = vmatpush1.xpose.msra.mxu0 0.0
    %380 = vmatprep.subr.mxu0 0.0
    %381 = vmatpush1.xpose.msra.mxu0 0.0
    %382 = vmatprep.subr.mxu0 0.0
    %383 = vmatpush1.xpose.msra.mxu0 0.0
    %384 = vmatprep.subr.mxu0 0.0
    %385 = vmatpush1.xpose.msra.mxu0 0.0
    %386 = vmatprep.subr.mxu0 0.0
    %387 = vmatpush1.xpose.msra.mxu0 0.0
    %388 = vmatprep.subr.mxu0 0.0
    %389 = vmatpush1.xpose.msra.mxu0 0.0
    %390 = vmatprep.subr.mxu0 0.0
    %391 = vmatpush1.xpose.msra.mxu0 0.0
    %392 = vmatprep.subr.mxu0 0.0
    %393 = vmatpush1.xpose.msra.mxu0 0.0
    %394 = vmatprep.subr.mxu0 0.0
    %395 = vmatpush1.xpose.msra.mxu0 0.0
    %396 = vmatprep.subr.mxu0 0.0
    %397 = vmatpush1.xpose.msra.mxu0 0.0
    %398 = vmatprep.mubr.f32.mxu0 0.0
    %399 = vmatmul.mubr.f32.gmra.mrb[0].mxu0 %v333
    %v400 = vpop.f32.mrb[0].mxu0
    %v401 = vadd.f32 0.0, %v400
    %v402 = vpop.f32.mrb[0].mxu0
    %403 = vdwg.mxu0
    %v404 = vld [vmem:[%s6] sm:$0x1]
    %v406 = vlaneseq
    %v407 = vshrl.u32 %v406, 7
    %v408 = vsub.s32 0, %v407
    %v409 = vrot.slane %v404, %v408
    %v411 = vmul.f32 %v271, %v409
    %v412 = vmul.f32 %v274, %v409
    %v413 = vmul.f32 %v279, %v409
    %v414 = vmul.f32 %v282, %v409
    %v415 = vmul.f32 %v287, %v409
    %v416 = vmul.f32 %v290, %v409
    %v417 = vmul.f32 %v295, %v409
    %v418 = vmul.f32 %v298, %v409
    %v419 = vmul.f32 %v303, %v409
    %v420 = vmul.f32 %v306, %v409
    %v421 = vmul.f32 %v311, %v409
    %v422 = vmul.f32 %v314, %v409
    %v423 = vmul.f32 %v319, %v409
    %v424 = vmul.f32 %v322, %v409
    %v425 = vmul.f32 %v327, %v409
    %v426 = vmul.f32 %v330, %v409
    %427 = vadd.xlane.f32.xlu0 %v411
    %v428 = vpop.xlane.xlu0 %427
    %429 = vadd.xlane.f32.xlu0 %v412
    %v430 = vpop.xlane.xlu0 %429
    %431 = vadd.xlane.f32.xlu0 %v413
    %v432 = vpop.xlane.xlu0 %431
    %433 = vadd.xlane.f32.xlu0 %v414
    %v434 = vpop.xlane.xlu0 %433
    %435 = vadd.xlane.f32.xlu0 %v415
    %v436 = vpop.xlane.xlu0 %435
    %437 = vadd.xlane.f32.xlu0 %v416
    %v438 = vpop.xlane.xlu0 %437
    %439 = vadd.xlane.f32.xlu0 %v417
    %v440 = vpop.xlane.xlu0 %439
    %441 = vadd.xlane.f32.xlu0 %v418
    %v442 = vpop.xlane.xlu0 %441
    %443 = vadd.xlane.f32.xlu0 %v419
    %v444 = vpop.xlane.xlu0 %443
    %445 = vadd.xlane.f32.xlu0 %v420
    %v446 = vpop.xlane.xlu0 %445
    %447 = vadd.xlane.f32.xlu0 %v421
    %v448 = vpop.xlane.xlu0 %447
    %449 = vadd.xlane.f32.xlu0 %v422
    %v450 = vpop.xlane.xlu0 %449
    %451 = vadd.xlane.f32.xlu0 %v423
    %v452 = vpop.xlane.xlu0 %451
    %453 = vadd.xlane.f32.xlu0 %v424
    %v454 = vpop.xlane.xlu0 %453
    %455 = vadd.xlane.f32.xlu0 %v425
    %v456 = vpop.xlane.xlu0 %455
    %457 = vadd.xlane.f32.xlu0 %v426
    %v458 = vpop.xlane.xlu0 %457
    %v459 = vlaneseq
    %v460 = vshrl.u32 %v459, 7
    %v461 = vsub.s32 0, %v460
    %v462 = vrot.slane %v401, %v461
    %v463 = vadd.f32 %v428, %v462
    %v464 = vadd.f32 %v430, %v462
    %v465 = vadd.f32 %v432, %v462
    %v466 = vadd.f32 %v434, %v462
    %v467 = vadd.f32 %v436, %v462
    %v468 = vadd.f32 %v438, %v462
    %v469 = vadd.f32 %v440, %v462
    %v470 = vadd.f32 %v442, %v462
    %v471 = vadd.f32 %v444, %v462
    %v472 = vadd.f32 %v446, %v462
    %v473 = vadd.f32 %v448, %v462
    %v474 = vadd.f32 %v450, %v462
    %v475 = vadd.f32 %v452, %v462
    %v476 = vadd.f32 %v454, %v462
    %v477 = vadd.f32 %v456, %v462
    %v478 = vadd.f32 %v458, %v462
    %vm479 = vcmp.gt.f32.partialorder %v463, 0.0
    %vm480 = vcmp.gt.f32.partialorder %v464, 0.0
    %vm481 = vcmp.gt.f32.partialorder %v465, 0.0
    %vm482 = vcmp.gt.f32.partialorder %v466, 0.0
    %vm483 = vcmp.gt.f32.partialorder %v467, 0.0
    %vm484 = vcmp.gt.f32.partialorder %v468, 0.0
    %vm485 = vcmp.gt.f32.partialorder %v469, 0.0
    %vm486 = vcmp.gt.f32.partialorder %v470, 0.0
    %vm487 = vcmp.gt.f32.partialorder %v471, 0.0
    %vm488 = vcmp.gt.f32.partialorder %v472, 0.0
    %vm489 = vcmp.gt.f32.partialorder %v473, 0.0
    %vm490 = vcmp.gt.f32.partialorder %v474, 0.0
    %vm491 = vcmp.gt.f32.partialorder %v475, 0.0
    %vm492 = vcmp.gt.f32.partialorder %v476, 0.0
    %vm493 = vcmp.gt.f32.partialorder %v477, 0.0
    %vm494 = vcmp.gt.f32.partialorder %v478, 0.0
    %v495 = vmul.f32 %v463, 0.2
    %v496 = vmul.f32 %v464, 0.2
    %v497 = vmul.f32 %v465, 0.2
    %v498 = vmul.f32 %v466, 0.2
    %v499 = vmul.f32 %v467, 0.2
    %v500 = vmul.f32 %v468, 0.2
    %v501 = vmul.f32 %v469, 0.2
    %v502 = vmul.f32 %v470, 0.2
    %v503 = vmul.f32 %v471, 0.2
    %v504 = vmul.f32 %v472, 0.2
    %v505 = vmul.f32 %v473, 0.2
    %v506 = vmul.f32 %v474, 0.2
    %v507 = vmul.f32 %v475, 0.2
    %v508 = vmul.f32 %v476, 0.2
    %v509 = vmul.f32 %v477, 0.2
    %v510 = vmul.f32 %v478, 0.2
    %v511 = vsel %vm479, %v463, %v495
    %v512 = vsel %vm480, %v464, %v496
    %v513 = vsel %vm481, %v465, %v497
    %v514 = vsel %vm482, %v466, %v498
    %v515 = vsel %vm483, %v467, %v499
    %v516 = vsel %vm484, %v468, %v500
    %v517 = vsel %vm485, %v469, %v501
    %v518 = vsel %vm486, %v470, %v502
    %v519 = vsel %vm487, %v471, %v503
    %v520 = vsel %vm488, %v472, %v504
    %v521 = vsel %vm489, %v473, %v505
    %v522 = vsel %vm490, %v474, %v506
    %v523 = vsel %vm491, %v475, %v507
    %v524 = vsel %vm492, %v476, %v508
    %v525 = vsel %vm493, %v477, %v509
    %v526 = vsel %vm494, %v478, %v510
    %v527 = vsel %vm184, 16843009, 0
    %v528 = vsel %vm185, 16843009, 0
    %v529 = vsel %vm186, 16843009, 0
    %v530 = vsel %vm187, 16843009, 0
    %v531 = vunpack.c.0.s8 %v527
    %v532 = vunpack.c.1.s8 %v527
    %v533 = vunpack.c.2.s8 %v527
    %v534 = vunpack.c.3.s8 %v527
    %v535 = vunpack.c.0.s8 %v528
    %v536 = vunpack.c.1.s8 %v528
    %v537 = vunpack.c.2.s8 %v528
    %v538 = vunpack.c.3.s8 %v528
    %v539 = vunpack.c.0.s8 %v529
    %v540 = vunpack.c.1.s8 %v529
    %v541 = vunpack.c.2.s8 %v529
    %v542 = vunpack.c.3.s8 %v529
    %v543 = vunpack.c.0.s8 %v530
    %v544 = vunpack.c.1.s8 %v530
    %v545 = vunpack.c.2.s8 %v530
    %v546 = vunpack.c.3.s8 %v530
    %v547 = vpack.c.b16 %v531, %v531
    %v548 = vpack.c.b8 %v547, %v547
    %v549 = vpack.c.b16 %v532, %v532
    %v550 = vpack.c.b8 %v549, %v549
    %v551 = vpack.c.b16 %v533, %v533
    %v552 = vpack.c.b8 %v551, %v551
    %v553 = vpack.c.b16 %v534, %v534
    %v554 = vpack.c.b8 %v553, %v553
    %v555 = vpack.c.b16 %v535, %v535
    %v556 = vpack.c.b8 %v555, %v555
    %v557 = vpack.c.b16 %v536, %v536
    %v558 = vpack.c.b8 %v557, %v557
    %v559 = vpack.c.b16 %v537, %v537
    %v560 = vpack.c.b8 %v559, %v559
    %v561 = vpack.c.b16 %v538, %v538
    %v562 = vpack.c.b8 %v561, %v561
    %v563 = vpack.c.b16 %v539, %v539
    %v564 = vpack.c.b8 %v563, %v563
    %v565 = vpack.c.b16 %v540, %v540
    %v566 = vpack.c.b8 %v565, %v565
    %v567 = vpack.c.b16 %v541, %v541
    %v568 = vpack.c.b8 %v567, %v567
    %v569 = vpack.c.b16 %v542, %v542
    %v570 = vpack.c.b8 %v569, %v569
    %v571 = vpack.c.b16 %v543, %v543
    %v572 = vpack.c.b8 %v571, %v571
    %v573 = vpack.c.b16 %v544, %v544
    %v574 = vpack.c.b8 %v573, %v573
    %v575 = vpack.c.b16 %v545, %v545
    %v576 = vpack.c.b8 %v575, %v575
    %v577 = vpack.c.b16 %v546, %v546
    %v578 = vpack.c.b8 %v577, %v577
    %vm579 = vnez %v548
    %vm580 = vnez %v550
    %vm581 = vnez %v552
    %vm582 = vnez %v554
    %vm583 = vnez %v556
    %vm584 = vnez %v558
    %vm585 = vnez %v560
    %vm586 = vnez %v562
    %vm587 = vnez %v564
    %vm588 = vnez %v566
    %vm589 = vnez %v568
    %vm590 = vnez %v570
    %vm591 = vnez %v572
    %vm592 = vnez %v574
    %vm593 = vnez %v576
    %vm594 = vnez %v578
    %v595 = vsel %vm579, 16843009, 0
    %v596 = vsel %vm580, 16843009, 0
    %v597 = vsel %vm581, 16843009, 0
    %v598 = vsel %vm582, 16843009, 0
    %v599 = vsel %vm583, 16843009, 0
    %v600 = vsel %vm584, 16843009, 0
    %v601 = vsel %vm585, 16843009, 0
    %v602 = vsel %vm586, 16843009, 0
    %v603 = vsel %vm587, 16843009, 0
    %v604 = vsel %vm588, 16843009, 0
    %v605 = vsel %vm589, 16843009, 0
    %v606 = vsel %vm590, 16843009, 0
    %v607 = vsel %vm591, 16843009, 0
    %v608 = vsel %vm592, 16843009, 0
    %v609 = vsel %vm593, 16843009, 0
    %v610 = vsel %vm594, 16843009, 0
    %v611 = vunpack.c.0.s8 %v595
    %v612 = vunpack.c.0.s8 %v596
    %v613 = vunpack.c.0.s8 %v597
    %v614 = vunpack.c.0.s8 %v598
    %v615 = vunpack.c.0.s8 %v599
    %v616 = vunpack.c.0.s8 %v600
    %v617 = vunpack.c.0.s8 %v601
    %v618 = vunpack.c.0.s8 %v602
    %v619 = vunpack.c.0.s8 %v603
    %v620 = vunpack.c.0.s8 %v604
    %v621 = vunpack.c.0.s8 %v605
    %v622 = vunpack.c.0.s8 %v606
    %v623 = vunpack.c.0.s8 %v607
    %v624 = vunpack.c.0.s8 %v608
    %v625 = vunpack.c.0.s8 %v609
    %v626 = vunpack.c.0.s8 %v610
    %vm627 = vcmp.ne.s32.totalorder %v611, 0
    %vm628 = vcmp.ne.s32.totalorder %v612, 0
    %vm629 = vcmp.ne.s32.totalorder %v613, 0
    %vm630 = vcmp.ne.s32.totalorder %v614, 0
    %vm631 = vcmp.ne.s32.totalorder %v615, 0
    %vm632 = vcmp.ne.s32.totalorder %v616, 0
    %vm633 = vcmp.ne.s32.totalorder %v617, 0
    %vm634 = vcmp.ne.s32.totalorder %v618, 0
    %vm635 = vcmp.ne.s32.totalorder %v619, 0
    %vm636 = vcmp.ne.s32.totalorder %v620, 0
    %vm637 = vcmp.ne.s32.totalorder %v621, 0
    %vm638 = vcmp.ne.s32.totalorder %v622, 0
    %vm639 = vcmp.ne.s32.totalorder %v623, 0
    %vm640 = vcmp.ne.s32.totalorder %v624, 0
    %vm641 = vcmp.ne.s32.totalorder %v625, 0
    %vm642 = vcmp.ne.s32.totalorder %v626, 0
    %v643 = vsel %vm627, %v511, -1e+30
    %v644 = vsel %vm628, %v512, -1e+30
    %v645 = vsel %vm629, %v513, -1e+30
    %v646 = vsel %vm630, %v514, -1e+30
    %v647 = vsel %vm631, %v515, -1e+30
    %v648 = vsel %vm632, %v516, -1e+30
    %v649 = vsel %vm633, %v517, -1e+30
    %v650 = vsel %vm634, %v518, -1e+30
    %v651 = vsel %vm635, %v519, -1e+30
    %v652 = vsel %vm636, %v520, -1e+30
    %v653 = vsel %vm637, %v521, -1e+30
    %v654 = vsel %vm638, %v522, -1e+30
    %v655 = vsel %vm639, %v523, -1e+30
    %v656 = vsel %vm640, %v524, -1e+30
    %v657 = vsel %vm641, %v525, -1e+30
    %v658 = vsel %vm642, %v526, -1e+30
    %659 = vmax.xlane.f32.xlu0 %v643
    %v660 = vpop.xlane.xlu0 %659
    %661 = vmax.xlane.f32.xlu0 %v644
    %v662 = vpop.xlane.xlu0 %661
    %663 = vmax.xlane.f32.xlu0 %v645
    %v664 = vpop.xlane.xlu0 %663
    %665 = vmax.xlane.f32.xlu0 %v646
    %v666 = vpop.xlane.xlu0 %665
    %667 = vmax.xlane.f32.xlu0 %v647
    %v668 = vpop.xlane.xlu0 %667
    %669 = vmax.xlane.f32.xlu0 %v648
    %v670 = vpop.xlane.xlu0 %669
    %671 = vmax.xlane.f32.xlu0 %v649
    %v672 = vpop.xlane.xlu0 %671
    %673 = vmax.xlane.f32.xlu0 %v650
    %v674 = vpop.xlane.xlu0 %673
    %675 = vmax.xlane.f32.xlu0 %v651
    %v676 = vpop.xlane.xlu0 %675
    %677 = vmax.xlane.f32.xlu0 %v652
    %v678 = vpop.xlane.xlu0 %677
    %679 = vmax.xlane.f32.xlu0 %v653
    %v680 = vpop.xlane.xlu0 %679
    %681 = vmax.xlane.f32.xlu0 %v654
    %v682 = vpop.xlane.xlu0 %681
    %683 = vmax.xlane.f32.xlu0 %v655
    %v684 = vpop.xlane.xlu0 %683
    %685 = vmax.xlane.f32.xlu0 %v656
    %v686 = vpop.xlane.xlu0 %685
    %687 = vmax.xlane.f32.xlu0 %v657
    %v688 = vpop.xlane.xlu0 %687
    %689 = vmax.xlane.f32.xlu0 %v658
    %v690 = vpop.xlane.xlu0 %689
    %v691 = vsub.f32 %v643, %v660
    %v692 = vsub.f32 %v644, %v662
    %v693 = vsub.f32 %v645, %v664
    %v694 = vsub.f32 %v646, %v666
    %v695 = vsub.f32 %v647, %v668
    %v696 = vsub.f32 %v648, %v670
    %v697 = vsub.f32 %v649, %v672
    %v698 = vsub.f32 %v650, %v674
    %v699 = vsub.f32 %v651, %v676
    %v700 = vsub.f32 %v652, %v678
    %v701 = vsub.f32 %v653, %v680
    %v702 = vsub.f32 %v654, %v682
    %v703 = vsub.f32 %v655, %v684
    %v704 = vsub.f32 %v656, %v686
    %v705 = vsub.f32 %v657, %v688
    %v706 = vsub.f32 %v658, %v690
    %v707 = vmul.f32 %v691, 1.442695
    %v708 = vpow.pop %v707
    %v709 = vmul.f32 %v692, 1.442695
    %v710 = vpow.pop %v709
    %v711 = vmul.f32 %v693, 1.442695
    %v712 = vpow.pop %v711
    %v713 = vmul.f32 %v694, 1.442695
    %v714 = vpow.pop %v713
    %v715 = vmul.f32 %v695, 1.442695
    %v716 = vpow.pop %v715
    %v717 = vmul.f32 %v696, 1.442695
    %v718 = vpow.pop %v717
    %v719 = vmul.f32 %v697, 1.442695
    %v720 = vpow.pop %v719
    %v721 = vmul.f32 %v698, 1.442695
    %v722 = vpow.pop %v721
    %v723 = vmul.f32 %v699, 1.442695
    %v724 = vpow.pop %v723
    %v725 = vmul.f32 %v700, 1.442695
    %v726 = vpow.pop %v725
    %v727 = vmul.f32 %v701, 1.442695
    %v728 = vpow.pop %v727
    %v729 = vmul.f32 %v702, 1.442695
    %v730 = vpow.pop %v729
    %v731 = vmul.f32 %v703, 1.442695
    %v732 = vpow.pop %v731
    %v733 = vmul.f32 %v704, 1.442695
    %v734 = vpow.pop %v733
    %v735 = vmul.f32 %v705, 1.442695
    %v736 = vpow.pop %v735
    %v737 = vmul.f32 %v706, 1.442695
    %v738 = vpow.pop %v737
    %739 = vadd.xlane.f32.xlu0 %v708
    %v740 = vpop.xlane.xlu0 %739
    %741 = vadd.xlane.f32.xlu0 %v710
    %v742 = vpop.xlane.xlu0 %741
    %743 = vadd.xlane.f32.xlu0 %v712
    %v744 = vpop.xlane.xlu0 %743
    %745 = vadd.xlane.f32.xlu0 %v714
    %v746 = vpop.xlane.xlu0 %745
    %747 = vadd.xlane.f32.xlu0 %v716
    %v748 = vpop.xlane.xlu0 %747
    %749 = vadd.xlane.f32.xlu0 %v718
    %v750 = vpop.xlane.xlu0 %749
    %751 = vadd.xlane.f32.xlu0 %v720
    %v752 = vpop.xlane.xlu0 %751
    %753 = vadd.xlane.f32.xlu0 %v722
    %v754 = vpop.xlane.xlu0 %753
    %755 = vadd.xlane.f32.xlu0 %v724
    %v756 = vpop.xlane.xlu0 %755
    %757 = vadd.xlane.f32.xlu0 %v726
    %v758 = vpop.xlane.xlu0 %757
    %759 = vadd.xlane.f32.xlu0 %v728
    %v760 = vpop.xlane.xlu0 %759
    %761 = vadd.xlane.f32.xlu0 %v730
    %v762 = vpop.xlane.xlu0 %761
    %763 = vadd.xlane.f32.xlu0 %v732
    %v764 = vpop.xlane.xlu0 %763
    %765 = vadd.xlane.f32.xlu0 %v734
    %v766 = vpop.xlane.xlu0 %765
    %767 = vadd.xlane.f32.xlu0 %v736
    %v768 = vpop.xlane.xlu0 %767
    %769 = vadd.xlane.f32.xlu0 %v738
    %v770 = vpop.xlane.xlu0 %769
    %v771 = vpack.c.bf16 %v710, %v708
    %v772 = vpack.c.bf16 %v714, %v712
    %v773 = vpack.c.bf16 %v718, %v716
    %v774 = vpack.c.bf16 %v722, %v720
    %v775 = vpack.c.bf16 %v726, %v724
    %v776 = vpack.c.bf16 %v730, %v728
    %v777 = vpack.c.bf16 %v734, %v732
    %v778 = vpack.c.bf16 %v738, %v736
    %v779 = vpack.c.bf16 %v274, %v271
    %v780 = vpack.c.bf16 %v282, %v279
    %v781 = vpack.c.bf16 %v290, %v287
    %v782 = vpack.c.bf16 %v298, %v295
    %v783 = vpack.c.bf16 %v306, %v303
    %v784 = vpack.c.bf16 %v314, %v311
    %v785 = vpack.c.bf16 %v322, %v319
    %v786 = vpack.c.bf16 %v330, %v327
    %787 = vmatprep.subr.bf16.mxu0 0
    %788 = vmatpush1.bf16.msra.mxu0 %v779
    %789 = vmatprep.subr.bf16.mxu0 0
    %790 = vmatpush1.bf16.msra.mxu0 %v780
    %791 = vmatprep.subr.bf16.mxu0 0
    %792 = vmatpush1.bf16.msra.mxu0 %v781
    %793 = vmatprep.subr.bf16.mxu0 0
    %794 = vmatpush1.bf16.msra.mxu0 %v782
    %795 = vmatprep.subr.bf16.mxu0 0
    %796 = vmatpush1.bf16.msra.mxu0 %v783
    %797 = vmatprep.subr.bf16.mxu0 0
    %798 = vmatpush1.bf16.msra.mxu0 %v784
    %799 = vmatprep.subr.bf16.mxu0 0
    %800 = vmatpush1.bf16.msra.mxu0 %v785
    %801 = vmatprep.subr.bf16.mxu0 0
    %802 = vmatpush1.bf16.msra.mxu0 %v786
    %803 = vmatprep.subr.bf16.mxu0 0
    %804 = vmatpush1.bf16.msra.mxu0 0
    %805 = vmatprep.subr.bf16.mxu0 0
    %806 = vmatpush1.bf16.msra.mxu0 0
    %807 = vmatprep.subr.bf16.mxu0 0
    %808 = vmatpush1.bf16.msra.mxu0 0
    %809 = vmatprep.subr.bf16.mxu0 0
    %810 = vmatpush1.bf16.msra.mxu0 0
    %811 = vmatprep.subr.bf16.mxu0 0
    %812 = vmatpush1.bf16.msra.mxu0 0
    %813 = vmatprep.subr.bf16.mxu0 0
    %814 = vmatpush1.bf16.msra.mxu0 0
    %815 = vmatprep.subr.bf16.mxu0 0
    %816 = vmatpush1.bf16.msra.mxu0 0
    %817 = vmatprep.subr.bf16.mxu0 0
    %818 = vmatpush1.bf16.msra.mxu0 0
    %819 = vmatprep.mubr.bf16.mxu0 0
    %820 = vmatmul.mubr.bf16.gmra.mrb[0].mxu0 %v771
    %v821 = vpop.f32.mrb[0].mxu0
    %v822 = vadd.f32 0.0, %v821
    %v823 = vpop.f32.mrb[0].mxu0
    %v824 = vpop.f32.mrb[0].mxu0
    %v825 = vadd.f32 0.0, %v824
    %v826 = vpop.f32.mrb[0].mxu0
    %827 = vmatprep.mubr.bf16.mxu0 0
    %828 = vmatmul.mubr.bf16.gmra.mrb[0].mxu0 %v772
    %v829 = vpop.f32.mrb[0].mxu0
    %v830 = vadd.f32 0.0, %v829
    %v831 = vpop.f32.mrb[0].mxu0
    %v832 = vpop.f32.mrb[0].mxu0
    %v833 = vadd.f32 0.0, %v832
    %v834 = vpop.f32.mrb[0].mxu0
    %835 = vmatprep.mubr.bf16.mxu0 0
    %836 = vmatmul.mubr.bf16.gmra.mrb[0].mxu0 %v773
    %v837 = vpop.f32.mrb[0].mxu0
    %v838 = vadd.f32 0.0, %v837
    %v839 = vpop.f32.mrb[0].mxu0
    %v840 = vpop.f32.mrb[0].mxu0
    %v841 = vadd.f32 0.0, %v840
    %v842 = vpop.f32.mrb[0].mxu0
    %843 = vmatprep.mubr.bf16.mxu0 0
    %844 = vmatmul.mubr.bf16.gmra.mrb[0].mxu0 %v774
    %v845 = vpop.f32.mrb[0].mxu0
    %v846 = vadd.f32 0.0, %v845
    %v847 = vpop.f32.mrb[0].mxu0
    %v848 = vpop.f32.mrb[0].mxu0
    %v849 = vadd.f32 0.0, %v848
    %v850 = vpop.f32.mrb[0].mxu0
    %851 = vmatprep.mubr.bf16.mxu0 0
    %852 = vmatmul.mubr.bf16.gmra.mrb[0].mxu0 %v775
    %v853 = vpop.f32.mrb[0].mxu0
    %v854 = vadd.f32 0.0, %v853
    %v855 = vpop.f32.mrb[0].mxu0
    %v856 = vpop.f32.mrb[0].mxu0
    %v857 = vadd.f32 0.0, %v856
    %v858 = vpop.f32.mrb[0].mxu0
    %859 = vmatprep.mubr.bf16.mxu0 0
    %860 = vmatmul.mubr.bf16.gmra.mrb[0].mxu0 %v776
    %v861 = vpop.f32.mrb[0].mxu0
    %v862 = vadd.f32 0.0, %v861
    %v863 = vpop.f32.mrb[0].mxu0
    %v864 = vpop.f32.mrb[0].mxu0
    %v865 = vadd.f32 0.0, %v864
    %v866 = vpop.f32.mrb[0].mxu0
    %867 = vmatprep.mubr.bf16.mxu0 0
    %868 = vmatmul.mubr.bf16.gmra.mrb[0].mxu0 %v777
    %v869 = vpop.f32.mrb[0].mxu0
    %v870 = vadd.f32 0.0, %v869
    %v871 = vpop.f32.mrb[0].mxu0
    %v872 = vpop.f32.mrb[0].mxu0
    %v873 = vadd.f32 0.0, %v872
    %v874 = vpop.f32.mrb[0].mxu0
    %875 = vmatprep.mubr.bf16.mxu0 0
    %876 = vmatmul.mubr.bf16.gmra.mrb[0].mxu0 %v778
    %v877 = vpop.f32.mrb[0].mxu0
    %v878 = vadd.f32 0.0, %v877
    %v879 = vpop.f32.mrb[0].mxu0
    %v880 = vpop.f32.mrb[0].mxu0
    %v881 = vadd.f32 0.0, %v880
    %v882 = vpop.f32.mrb[0].mxu0
    %883 = vdwg.mxu0
    %v884 = vrcp.pop %v740
    %v885 = vrcp.pop %v742
    %v886 = vrcp.pop %v744
    %v887 = vrcp.pop %v746
    %v888 = vrcp.pop %v748
    %v889 = vrcp.pop %v750
    %v890 = vrcp.pop %v752
    %v891 = vrcp.pop %v754
    %v892 = vrcp.pop %v756
    %v893 = vrcp.pop %v758
    %v894 = vrcp.pop %v760
    %v895 = vrcp.pop %v762
    %v896 = vrcp.pop %v764
    %v897 = vrcp.pop %v766
    %v898 = vrcp.pop %v768
    %v899 = vrcp.pop %v770
    %v900 = vmul.f32 %v822, %v884
    %v901 = vmul.f32 %v825, %v885
    %v902 = vmul.f32 %v830, %v886
    %v903 = vmul.f32 %v833, %v887
    %v904 = vmul.f32 %v838, %v888
    %v905 = vmul.f32 %v841, %v889
    %v906 = vmul.f32 %v846, %v890
    %v907 = vmul.f32 %v849, %v891
    %v908 = vmul.f32 %v854, %v892
    %v909 = vmul.f32 %v857, %v893
    %v910 = vmul.f32 %v862, %v894
    %v911 = vmul.f32 %v865, %v895
    %v912 = vmul.f32 %v870, %v896
    %v913 = vmul.f32 %v873, %v897
    %v914 = vmul.f32 %v878, %v898
    %v915 = vmul.f32 %v881, %v899
    %v916 = vld [vmem:[%s4] sm:$0x1]
    %v918 = vlaneseq
    %v919 = vshrl.u32 %v918, 7
    %v920 = vsub.s32 0, %v919
    %v921 = vrot.slane %v916, %v920
    %v923 = vadd.f32 %v900, %v921
    %v924 = vadd.f32 %v901, %v921
    %v925 = vadd.f32 %v902, %v921
    %v926 = vadd.f32 %v903, %v921
    %v927 = vadd.f32 %v904, %v921
    %v928 = vadd.f32 %v905, %v921
    %v929 = vadd.f32 %v906, %v921
    %v930 = vadd.f32 %v907, %v921
    %v931 = vadd.f32 %v908, %v921
    %v932 = vadd.f32 %v909, %v921
    %v933 = vadd.f32 %v910, %v921
    %v934 = vadd.f32 %v911, %v921
    %v935 = vadd.f32 %v912, %v921
    %v936 = vadd.f32 %v913, %v921
    %v937 = vadd.f32 %v914, %v921
    %v938 = vadd.f32 %v915, %v921
    %v939 = vmax.f32 %v923, 0.0
    %v940 = vmax.f32 %v924, 0.0
    %v941 = vmax.f32 %v925, 0.0
    %v942 = vmax.f32 %v926, 0.0
    %v943 = vmax.f32 %v927, 0.0
    %v944 = vmax.f32 %v928, 0.0
    %v945 = vmax.f32 %v929, 0.0
    %v946 = vmax.f32 %v930, 0.0
    %v947 = vmax.f32 %v931, 0.0
    %v948 = vmax.f32 %v932, 0.0
    %v949 = vmax.f32 %v933, 0.0
    %v950 = vmax.f32 %v934, 0.0
    %v951 = vmax.f32 %v935, 0.0
    %v952 = vmax.f32 %v936, 0.0
    %v953 = vmax.f32 %v937, 0.0
    %v954 = vmax.f32 %v938, 0.0
    %v955 = vld [vmem:[%s7] sm:$0x1]
    %v957 = vlaneseq
    %v958 = vshrl.u32 %v957, 7
    %v959 = vsub.s32 0, %v958
    %v960 = vrot.slane %v955, %v959
    %v962 = vmul.f32 %v939, %v960
    %v963 = vmul.f32 %v940, %v960
    %v964 = vmul.f32 %v941, %v960
    %v965 = vmul.f32 %v942, %v960
    %v966 = vmul.f32 %v943, %v960
    %v967 = vmul.f32 %v944, %v960
    %v968 = vmul.f32 %v945, %v960
    %v969 = vmul.f32 %v946, %v960
    %v970 = vmul.f32 %v947, %v960
    %v971 = vmul.f32 %v948, %v960
    %v972 = vmul.f32 %v949, %v960
    %v973 = vmul.f32 %v950, %v960
    %v974 = vmul.f32 %v951, %v960
    %v975 = vmul.f32 %v952, %v960
    %v976 = vmul.f32 %v953, %v960
    %v977 = vmul.f32 %v954, %v960
    %v978 = vld [vmem:[%s8] sm:$0x1]
    %v980 = vlaneseq
    %v981 = vshrl.u32 %v980, 7
    %v982 = vsub.s32 0, %v981
    %v983 = vrot.slane %v978, %v982
    %v985 = vadd.f32 %v962, %v983
    %v986 = vadd.f32 %v963, %v983
    %v987 = vadd.f32 %v964, %v983
    %v988 = vadd.f32 %v965, %v983
    %v989 = vadd.f32 %v966, %v983
    %v990 = vadd.f32 %v967, %v983
    %v991 = vadd.f32 %v968, %v983
    %v992 = vadd.f32 %v969, %v983
    %v993 = vadd.f32 %v970, %v983
    %v994 = vadd.f32 %v971, %v983
    %v995 = vadd.f32 %v972, %v983
    %v996 = vadd.f32 %v973, %v983
    %v997 = vadd.f32 %v974, %v983
    %v998 = vadd.f32 %v975, %v983
    %v999 = vadd.f32 %v976, %v983
    %v1000 = vadd.f32 %v977, %v983
    %v1001 = vpack.c.bf16 %v986, %v985
    %v1002 = vpack.c.bf16 %v988, %v987
    %v1003 = vpack.c.bf16 %v990, %v989
    %v1004 = vpack.c.bf16 %v992, %v991
    %v1005 = vpack.c.bf16 %v994, %v993
    %v1006 = vpack.c.bf16 %v996, %v995
    %v1007 = vpack.c.bf16 %v998, %v997
    %v1008 = vpack.c.bf16 %v1000, %v999
    %v1009 = vld [vmem:[%s9] sm:$0xff]
    %v1010 = vld [vmem:[%s9 + $0x8] sm:$0xff]
    %v1011 = vld [vmem:[%s9 + $0x10] sm:$0xff]
    %v1012 = vld [vmem:[%s9 + $0x18] sm:$0xff]
    %v1013 = vld [vmem:[%s9 + $0x20] sm:$0xff]
    %v1014 = vld [vmem:[%s9 + $0x28] sm:$0xff]
    %v1015 = vld [vmem:[%s9 + $0x30] sm:$0xff]
    %v1016 = vld [vmem:[%s9 + $0x38] sm:$0xff]
    %v1017 = vld [vmem:[%s9 + $0x40] sm:$0xff]
    %v1018 = vld [vmem:[%s9 + $0x48] sm:$0xff]
    %v1019 = vld [vmem:[%s9 + $0x50] sm:$0xff]
    %v1020 = vld [vmem:[%s9 + $0x58] sm:$0xff]
    %v1021 = vld [vmem:[%s9 + $0x60] sm:$0xff]
    %v1022 = vld [vmem:[%s9 + $0x68] sm:$0xff]
    %v1023 = vld [vmem:[%s9 + $0x70] sm:$0xff]
    %v1024 = vld [vmem:[%s9 + $0x78] sm:$0xff]
    %v1025 = vpack.c.bf16 %v1010, %v1009
    %v1026 = vpack.c.bf16 %v1012, %v1011
    %v1027 = vpack.c.bf16 %v1014, %v1013
    %v1028 = vpack.c.bf16 %v1016, %v1015
    %v1029 = vpack.c.bf16 %v1018, %v1017
    %v1030 = vpack.c.bf16 %v1020, %v1019
    %v1031 = vpack.c.bf16 %v1022, %v1021
    %v1032 = vpack.c.bf16 %v1024, %v1023
    %1033 = vmatprep.subr.bf16.mxu0 0
    %1034 = vmatpush1.bf16.msra.mxu0 %v1025
    %1035 = vmatprep.subr.bf16.mxu0 0
    %1036 = vmatpush1.bf16.msra.mxu0 %v1026
    %1037 = vmatprep.subr.bf16.mxu0 0
    %1038 = vmatpush1.bf16.msra.mxu0 %v1027
    %1039 = vmatprep.subr.bf16.mxu0 0
    %1040 = vmatpush1.bf16.msra.mxu0 %v1028
    %1041 = vmatprep.subr.bf16.mxu0 0
    %1042 = vmatpush1.bf16.msra.mxu0 %v1029
    %1043 = vmatprep.subr.bf16.mxu0 0
    %1044 = vmatpush1.bf16.msra.mxu0 %v1030
    %1045 = vmatprep.subr.bf16.mxu0 0
    %1046 = vmatpush1.bf16.msra.mxu0 %v1031
    %1047 = vmatprep.subr.bf16.mxu0 0
    %1048 = vmatpush1.bf16.msra.mxu0 %v1032
    %1049 = vmatprep.subr.bf16.mxu0 0
    %1050 = vmatpush1.bf16.msra.mxu0 0
    %1051 = vmatprep.subr.bf16.mxu0 0
    %1052 = vmatpush1.bf16.msra.mxu0 0
    %1053 = vmatprep.subr.bf16.mxu0 0
    %1054 = vmatpush1.bf16.msra.mxu0 0
    %1055 = vmatprep.subr.bf16.mxu0 0
    %1056 = vmatpush1.bf16.msra.mxu0 0
    %1057 = vmatprep.subr.bf16.mxu0 0
    %1058 = vmatpush1.bf16.msra.mxu0 0
    %1059 = vmatprep.subr.bf16.mxu0 0
    %1060 = vmatpush1.bf16.msra.mxu0 0
    %1061 = vmatprep.subr.bf16.mxu0 0
    %1062 = vmatpush1.bf16.msra.mxu0 0
    %1063 = vmatprep.subr.bf16.mxu0 0
    %1064 = vmatpush1.bf16.msra.mxu0 0
    %1065 = vmatprep.mubr.bf16.mxu0 0
    %1066 = vmatmul.mubr.bf16.gmra.mrb[0].mxu0 %v1001
    %v1067 = vpop.f32.mrb[0].mxu0
    %v1068 = vadd.f32 0.0, %v1067
    %v1069 = vpop.f32.mrb[0].mxu0
    %v1070 = vpop.f32.mrb[0].mxu0
    %v1071 = vadd.f32 0.0, %v1070
    %v1072 = vpop.f32.mrb[0].mxu0
    %1073 = vmatprep.mubr.bf16.mxu0 0
    %1074 = vmatmul.mubr.bf16.gmra.mrb[0].mxu0 %v1002
    %v1075 = vpop.f32.mrb[0].mxu0
    %v1076 = vadd.f32 0.0, %v1075
    %v1077 = vpop.f32.mrb[0].mxu0
    %v1078 = vpop.f32.mrb[0].mxu0
    %v1079 = vadd.f32 0.0, %v1078
    %v1080 = vpop.f32.mrb[0].mxu0
    %1081 = vmatprep.mubr.bf16.mxu0 0
    %1082 = vmatmul.mubr.bf16.gmra.mrb[0].mxu0 %v1003
    %v1083 = vpop.f32.mrb[0].mxu0
    %v1084 = vadd.f32 0.0, %v1083
    %v1085 = vpop.f32.mrb[0].mxu0
    %v1086 = vpop.f32.mrb[0].mxu0
    %v1087 = vadd.f32 0.0, %v1086
    %v1088 = vpop.f32.mrb[0].mxu0
    %1089 = vmatprep.mubr.bf16.mxu0 0
    %1090 = vmatmul.mubr.bf16.gmra.mrb[0].mxu0 %v1004
    %v1091 = vpop.f32.mrb[0].mxu0
    %v1092 = vadd.f32 0.0, %v1091
    %v1093 = vpop.f32.mrb[0].mxu0
    %v1094 = vpop.f32.mrb[0].mxu0
    %v1095 = vadd.f32 0.0, %v1094
    %v1096 = vpop.f32.mrb[0].mxu0
    %1097 = vmatprep.mubr.bf16.mxu0 0
    %1098 = vmatmul.mubr.bf16.gmra.mrb[0].mxu0 %v1005
    %v1099 = vpop.f32.mrb[0].mxu0
    %v1100 = vadd.f32 0.0, %v1099
    %v1101 = vpop.f32.mrb[0].mxu0
    %v1102 = vpop.f32.mrb[0].mxu0
    %v1103 = vadd.f32 0.0, %v1102
    %v1104 = vpop.f32.mrb[0].mxu0
    %1105 = vmatprep.mubr.bf16.mxu0 0
    %1106 = vmatmul.mubr.bf16.gmra.mrb[0].mxu0 %v1006
    %v1107 = vpop.f32.mrb[0].mxu0
    %v1108 = vadd.f32 0.0, %v1107
    %v1109 = vpop.f32.mrb[0].mxu0
    %v1110 = vpop.f32.mrb[0].mxu0
    %v1111 = vadd.f32 0.0, %v1110
    %v1112 = vpop.f32.mrb[0].mxu0
    %1113 = vmatprep.mubr.bf16.mxu0 0
    %1114 = vmatmul.mubr.bf16.gmra.mrb[0].mxu0 %v1007
    %v1115 = vpop.f32.mrb[0].mxu0
    %v1116 = vadd.f32 0.0, %v1115
    %v1117 = vpop.f32.mrb[0].mxu0
    %v1118 = vpop.f32.mrb[0].mxu0
    %v1119 = vadd.f32 0.0, %v1118
    %v1120 = vpop.f32.mrb[0].mxu0
    %1121 = vmatprep.mubr.bf16.mxu0 0
    %1122 = vmatmul.mubr.bf16.gmra.mrb[0].mxu0 %v1008
    %v1123 = vpop.f32.mrb[0].mxu0
    %v1124 = vadd.f32 0.0, %v1123
    %v1125 = vpop.f32.mrb[0].mxu0
    %v1126 = vpop.f32.mrb[0].mxu0
    %v1127 = vadd.f32 0.0, %v1126
    %v1128 = vpop.f32.mrb[0].mxu0
    %1129 = vdwg.mxu0
    %v1130 = vld [vmem:[#allocation6] sm:$0x1]
    %1131 = vmatprep.subr.mxu0 0.0
    %1132 = vmatpush1.xpose.msra.mxu0 %v1068
    %1133 = vmatprep.subr.mxu0 0.0
    %1134 = vmatpush1.xpose.msra.mxu0 %v1071
    %1135 = vmatprep.subr.mxu0 0.0
    %1136 = vmatpush1.xpose.msra.mxu0 %v1076
    %1137 = vmatprep.subr.mxu0 0.0
    %1138 = vmatpush1.xpose.msra.mxu0 %v1079
    %1139 = vmatprep.subr.mxu0 0.0
    %1140 = vmatpush1.xpose.msra.mxu0 %v1084
    %1141 = vmatprep.subr.mxu0 0.0
    %1142 = vmatpush1.xpose.msra.mxu0 %v1087
    %1143 = vmatprep.subr.mxu0 0.0
    %1144 = vmatpush1.xpose.msra.mxu0 %v1092
    %1145 = vmatprep.subr.mxu0 0.0
    %1146 = vmatpush1.xpose.msra.mxu0 %v1095
    %1147 = vmatprep.subr.mxu0 0.0
    %1148 = vmatpush1.xpose.msra.mxu0 %v1100
    %1149 = vmatprep.subr.mxu0 0.0
    %1150 = vmatpush1.xpose.msra.mxu0 %v1103
    %1151 = vmatprep.subr.mxu0 0.0
    %1152 = vmatpush1.xpose.msra.mxu0 %v1108
    %1153 = vmatprep.subr.mxu0 0.0
    %1154 = vmatpush1.xpose.msra.mxu0 %v1111
    %1155 = vmatprep.subr.mxu0 0.0
    %1156 = vmatpush1.xpose.msra.mxu0 %v1116
    %1157 = vmatprep.subr.mxu0 0.0
    %1158 = vmatpush1.xpose.msra.mxu0 %v1119
    %1159 = vmatprep.subr.mxu0 0.0
    %1160 = vmatpush1.xpose.msra.mxu0 %v1124
    %1161 = vmatprep.subr.mxu0 0.0
    %1162 = vmatpush1.xpose.msra.mxu0 %v1127
    %1163 = vmatprep.subr.mxu0 0.0
    %1164 = vmatpush1.xpose.msra.mxu0 0.0
    %1165 = vmatprep.subr.mxu0 0.0
    %1166 = vmatpush1.xpose.msra.mxu0 0.0
    %1167 = vmatprep.subr.mxu0 0.0
    %1168 = vmatpush1.xpose.msra.mxu0 0.0
    %1169 = vmatprep.subr.mxu0 0.0
    %1170 = vmatpush1.xpose.msra.mxu0 0.0
    %1171 = vmatprep.subr.mxu0 0.0
    %1172 = vmatpush1.xpose.msra.mxu0 0.0
    %1173 = vmatprep.subr.mxu0 0.0
    %1174 = vmatpush1.xpose.msra.mxu0 0.0
    %1175 = vmatprep.subr.mxu0 0.0
    %1176 = vmatpush1.xpose.msra.mxu0 0.0
    %1177 = vmatprep.subr.mxu0 0.0
    %1178 = vmatpush1.xpose.msra.mxu0 0.0
    %1179 = vmatprep.subr.mxu0 0.0
    %1180 = vmatpush1.xpose.msra.mxu0 0.0
    %1181 = vmatprep.subr.mxu0 0.0
    %1182 = vmatpush1.xpose.msra.mxu0 0.0
    %1183 = vmatprep.subr.mxu0 0.0
    %1184 = vmatpush1.xpose.msra.mxu0 0.0
    %1185 = vmatprep.subr.mxu0 0.0
    %1186 = vmatpush1.xpose.msra.mxu0 0.0
    %1187 = vmatprep.subr.mxu0 0.0
    %1188 = vmatpush1.xpose.msra.mxu0 0.0
    %1189 = vmatprep.subr.mxu0 0.0
    %1190 = vmatpush1.xpose.msra.mxu0 0.0
    %1191 = vmatprep.subr.mxu0 0.0
    %1192 = vmatpush1.xpose.msra.mxu0 0.0
    %1193 = vmatprep.subr.mxu0 0.0
    %1194 = vmatpush1.xpose.msra.mxu0 0.0
    %1195 = vmatprep.mubr.f32.mxu0 0.0
    %1196 = vmatmul.mubr.f32.gmra.mrb[0].mxu0 %v1130
    %v1197 = vpop.f32.mrb[0].mxu0
    %v1198 = vadd.f32 0.0, %v1197
    %v1199 = vpop.f32.mrb[0].mxu0
    %1200 = vdwg.mxu0
    %v1201 = vld [vmem:[#allocation7] sm:$0x1]
    %v1203 = vlaneseq
    %v1204 = vshrl.u32 %v1203, 7
    %v1205 = vsub.s32 0, %v1204
    %v1206 = vrot.slane %v1201, %v1205
    %v1208 = vmul.f32 %v1068, %v1206
    %v1209 = vmul.f32 %v1071, %v1206
    %v1210 = vmul.f32 %v1076, %v1206
    %v1211 = vmul.f32 %v1079, %v1206
    %v1212 = vmul.f32 %v1084, %v1206
    %v1213 = vmul.f32 %v1087, %v1206
    %v1214 = vmul.f32 %v1092, %v1206
    %v1215 = vmul.f32 %v1095, %v1206
    %v1216 = vmul.f32 %v1100, %v1206
    %v1217 = vmul.f32 %v1103, %v1206
    %v1218 = vmul.f32 %v1108, %v1206
    %v1219 = vmul.f32 %v1111, %v1206
    %v1220 = vmul.f32 %v1116, %v1206
    %v1221 = vmul.f32 %v1119, %v1206
    %v1222 = vmul.f32 %v1124, %v1206
    %v1223 = vmul.f32 %v1127, %v1206
    %1224 = vadd.xlane.f32.xlu0 %v1208
    %v1225 = vpop.xlane.xlu0 %1224
    %1226 = vadd.xlane.f32.xlu0 %v1209
    %v1227 = vpop.xlane.xlu0 %1226
    %1228 = vadd.xlane.f32.xlu0 %v1210
    %v1229 = vpop.xlane.xlu0 %1228
    %1230 = vadd.xlane.f32.xlu0 %v1211
    %v1231 = vpop.xlane.xlu0 %1230
    %1232 = vadd.xlane.f32.xlu0 %v1212
    %v1233 = vpop.xlane.xlu0 %1232
    %1234 = vadd.xlane.f32.xlu0 %v1213
    %v1235 = vpop.xlane.xlu0 %1234
    %1236 = vadd.xlane.f32.xlu0 %v1214
    %v1237 = vpop.xlane.xlu0 %1236
    %1238 = vadd.xlane.f32.xlu0 %v1215
    %v1239 = vpop.xlane.xlu0 %1238
    %1240 = vadd.xlane.f32.xlu0 %v1216
    %v1241 = vpop.xlane.xlu0 %1240
    %1242 = vadd.xlane.f32.xlu0 %v1217
    %v1243 = vpop.xlane.xlu0 %1242
    %1244 = vadd.xlane.f32.xlu0 %v1218
    %v1245 = vpop.xlane.xlu0 %1244
    %1246 = vadd.xlane.f32.xlu0 %v1219
    %v1247 = vpop.xlane.xlu0 %1246
    %1248 = vadd.xlane.f32.xlu0 %v1220
    %v1249 = vpop.xlane.xlu0 %1248
    %1250 = vadd.xlane.f32.xlu0 %v1221
    %v1251 = vpop.xlane.xlu0 %1250
    %1252 = vadd.xlane.f32.xlu0 %v1222
    %v1253 = vpop.xlane.xlu0 %1252
    %1254 = vadd.xlane.f32.xlu0 %v1223
    %v1255 = vpop.xlane.xlu0 %1254
    %v1256 = vlaneseq
    %v1257 = vshrl.u32 %v1256, 7
    %v1258 = vsub.s32 0, %v1257
    %v1259 = vrot.slane %v1198, %v1258
    %v1260 = vadd.f32 %v1225, %v1259
    %v1261 = vadd.f32 %v1227, %v1259
    %v1262 = vadd.f32 %v1229, %v1259
    %v1263 = vadd.f32 %v1231, %v1259
    %v1264 = vadd.f32 %v1233, %v1259
    %v1265 = vadd.f32 %v1235, %v1259
    %v1266 = vadd.f32 %v1237, %v1259
    %v1267 = vadd.f32 %v1239, %v1259
    %v1268 = vadd.f32 %v1241, %v1259
    %v1269 = vadd.f32 %v1243, %v1259
    %v1270 = vadd.f32 %v1245, %v1259
    %v1271 = vadd.f32 %v1247, %v1259
    %v1272 = vadd.f32 %v1249, %v1259
    %v1273 = vadd.f32 %v1251, %v1259
    %v1274 = vadd.f32 %v1253, %v1259
    %v1275 = vadd.f32 %v1255, %v1259
    %vm1276 = vcmp.gt.f32.partialorder %v1260, 0.0
    %vm1277 = vcmp.gt.f32.partialorder %v1261, 0.0
    %vm1278 = vcmp.gt.f32.partialorder %v1262, 0.0
    %vm1279 = vcmp.gt.f32.partialorder %v1263, 0.0
    %vm1280 = vcmp.gt.f32.partialorder %v1264, 0.0
    %vm1281 = vcmp.gt.f32.partialorder %v1265, 0.0
    %vm1282 = vcmp.gt.f32.partialorder %v1266, 0.0
    %vm1283 = vcmp.gt.f32.partialorder %v1267, 0.0
    %vm1284 = vcmp.gt.f32.partialorder %v1268, 0.0
    %vm1285 = vcmp.gt.f32.partialorder %v1269, 0.0
    %vm1286 = vcmp.gt.f32.partialorder %v1270, 0.0
    %vm1287 = vcmp.gt.f32.partialorder %v1271, 0.0
    %vm1288 = vcmp.gt.f32.partialorder %v1272, 0.0
    %vm1289 = vcmp.gt.f32.partialorder %v1273, 0.0
    %vm1290 = vcmp.gt.f32.partialorder %v1274, 0.0
    %vm1291 = vcmp.gt.f32.partialorder %v1275, 0.0
    %v1292 = vmul.f32 %v1260, 0.2
    %v1293 = vmul.f32 %v1261, 0.2
    %v1294 = vmul.f32 %v1262, 0.2
    %v1295 = vmul.f32 %v1263, 0.2
    %v1296 = vmul.f32 %v1264, 0.2
    %v1297 = vmul.f32 %v1265, 0.2
    %v1298 = vmul.f32 %v1266, 0.2
    %v1299 = vmul.f32 %v1267, 0.2
    %v1300 = vmul.f32 %v1268, 0.2
    %v1301 = vmul.f32 %v1269, 0.2
    %v1302 = vmul.f32 %v1270, 0.2
    %v1303 = vmul.f32 %v1271, 0.2
    %v1304 = vmul.f32 %v1272, 0.2
    %v1305 = vmul.f32 %v1273, 0.2
    %v1306 = vmul.f32 %v1274, 0.2
    %v1307 = vmul.f32 %v1275, 0.2
    %v1308 = vsel %vm1276, %v1260, %v1292
    %v1309 = vsel %vm1277, %v1261, %v1293
    %v1310 = vsel %vm1278, %v1262, %v1294
    %v1311 = vsel %vm1279, %v1263, %v1295
    %v1312 = vsel %vm1280, %v1264, %v1296
    %v1313 = vsel %vm1281, %v1265, %v1297
    %v1314 = vsel %vm1282, %v1266, %v1298
    %v1315 = vsel %vm1283, %v1267, %v1299
    %v1316 = vsel %vm1284, %v1268, %v1300
    %v1317 = vsel %vm1285, %v1269, %v1301
    %v1318 = vsel %vm1286, %v1270, %v1302
    %v1319 = vsel %vm1287, %v1271, %v1303
    %v1320 = vsel %vm1288, %v1272, %v1304
    %v1321 = vsel %vm1289, %v1273, %v1305
    %v1322 = vsel %vm1290, %v1274, %v1306
    %v1323 = vsel %vm1291, %v1275, %v1307
    %v1324 = vsel %vm627, %v1308, -1e+30
    %v1325 = vsel %vm628, %v1309, -1e+30
    %v1326 = vsel %vm629, %v1310, -1e+30
    %v1327 = vsel %vm630, %v1311, -1e+30
    %v1328 = vsel %vm631, %v1312, -1e+30
    %v1329 = vsel %vm632, %v1313, -1e+30
    %v1330 = vsel %vm633, %v1314, -1e+30
    %v1331 = vsel %vm634, %v1315, -1e+30
    %v1332 = vsel %vm635, %v1316, -1e+30
    %v1333 = vsel %vm636, %v1317, -1e+30
    %v1334 = vsel %vm637, %v1318, -1e+30
    %v1335 = vsel %vm638, %v1319, -1e+30
    %v1336 = vsel %vm639, %v1320, -1e+30
    %v1337 = vsel %vm640, %v1321, -1e+30
    %v1338 = vsel %vm641, %v1322, -1e+30
    %v1339 = vsel %vm642, %v1323, -1e+30
    %1340 = vmax.xlane.f32.xlu0 %v1324
    %v1341 = vpop.xlane.xlu0 %1340
    %1342 = vmax.xlane.f32.xlu0 %v1325
    %v1343 = vpop.xlane.xlu0 %1342
    %1344 = vmax.xlane.f32.xlu0 %v1326
    %v1345 = vpop.xlane.xlu0 %1344
    %1346 = vmax.xlane.f32.xlu0 %v1327
    %v1347 = vpop.xlane.xlu0 %1346
    %1348 = vmax.xlane.f32.xlu0 %v1328
    %v1349 = vpop.xlane.xlu0 %1348
    %1350 = vmax.xlane.f32.xlu0 %v1329
    %v1351 = vpop.xlane.xlu0 %1350
    %1352 = vmax.xlane.f32.xlu0 %v1330
    %v1353 = vpop.xlane.xlu0 %1352
    %1354 = vmax.xlane.f32.xlu0 %v1331
    %v1355 = vpop.xlane.xlu0 %1354
    %1356 = vmax.xlane.f32.xlu0 %v1332
    %v1357 = vpop.xlane.xlu0 %1356
    %1358 = vmax.xlane.f32.xlu0 %v1333
    %v1359 = vpop.xlane.xlu0 %1358
    %1360 = vmax.xlane.f32.xlu0 %v1334
    %v1361 = vpop.xlane.xlu0 %1360
    %1362 = vmax.xlane.f32.xlu0 %v1335
    %v1363 = vpop.xlane.xlu0 %1362
    %1364 = vmax.xlane.f32.xlu0 %v1336
    %v1365 = vpop.xlane.xlu0 %1364
    %1366 = vmax.xlane.f32.xlu0 %v1337
    %v1367 = vpop.xlane.xlu0 %1366
    %1368 = vmax.xlane.f32.xlu0 %v1338
    %v1369 = vpop.xlane.xlu0 %1368
    %1370 = vmax.xlane.f32.xlu0 %v1339
    %v1371 = vpop.xlane.xlu0 %1370
    %v1372 = vsub.f32 %v1324, %v1341
    %v1373 = vsub.f32 %v1325, %v1343
    %v1374 = vsub.f32 %v1326, %v1345
    %v1375 = vsub.f32 %v1327, %v1347
    %v1376 = vsub.f32 %v1328, %v1349
    %v1377 = vsub.f32 %v1329, %v1351
    %v1378 = vsub.f32 %v1330, %v1353
    %v1379 = vsub.f32 %v1331, %v1355
    %v1380 = vsub.f32 %v1332, %v1357
    %v1381 = vsub.f32 %v1333, %v1359
    %v1382 = vsub.f32 %v1334, %v1361
    %v1383 = vsub.f32 %v1335, %v1363
    %v1384 = vsub.f32 %v1336, %v1365
    %v1385 = vsub.f32 %v1337, %v1367
    %v1386 = vsub.f32 %v1338, %v1369
    %v1387 = vsub.f32 %v1339, %v1371
    %v1388 = vmul.f32 %v1372, 1.442695
    %v1389 = vpow.pop %v1388
    %v1390 = vmul.f32 %v1373, 1.442695
    %v1391 = vpow.pop %v1390
    %v1392 = vmul.f32 %v1374, 1.442695
    %v1393 = vpow.pop %v1392
    %v1394 = vmul.f32 %v1375, 1.442695
    %v1395 = vpow.pop %v1394
    %v1396 = vmul.f32 %v1376, 1.442695
    %v1397 = vpow.pop %v1396
    %v1398 = vmul.f32 %v1377, 1.442695
    %v1399 = vpow.pop %v1398
    %v1400 = vmul.f32 %v1378, 1.442695
    %v1401 = vpow.pop %v1400
    %v1402 = vmul.f32 %v1379, 1.442695
    %v1403 = vpow.pop %v1402
    %v1404 = vmul.f32 %v1380, 1.442695
    %v1405 = vpow.pop %v1404
    %v1406 = vmul.f32 %v1381, 1.442695
    %v1407 = vpow.pop %v1406
    %v1408 = vmul.f32 %v1382, 1.442695
    %v1409 = vpow.pop %v1408
    %v1410 = vmul.f32 %v1383, 1.442695
    %v1411 = vpow.pop %v1410
    %v1412 = vmul.f32 %v1384, 1.442695
    %v1413 = vpow.pop %v1412
    %v1414 = vmul.f32 %v1385, 1.442695
    %v1415 = vpow.pop %v1414
    %v1416 = vmul.f32 %v1386, 1.442695
    %v1417 = vpow.pop %v1416
    %v1418 = vmul.f32 %v1387, 1.442695
    %v1419 = vpow.pop %v1418
    %1420 = vadd.xlane.f32.xlu0 %v1389
    %v1421 = vpop.xlane.xlu0 %1420
    %1422 = vadd.xlane.f32.xlu0 %v1391
    %v1423 = vpop.xlane.xlu0 %1422
    %1424 = vadd.xlane.f32.xlu0 %v1393
    %v1425 = vpop.xlane.xlu0 %1424
    %1426 = vadd.xlane.f32.xlu0 %v1395
    %v1427 = vpop.xlane.xlu0 %1426
    %1428 = vadd.xlane.f32.xlu0 %v1397
    %v1429 = vpop.xlane.xlu0 %1428
    %1430 = vadd.xlane.f32.xlu0 %v1399
    %v1431 = vpop.xlane.xlu0 %1430
    %1432 = vadd.xlane.f32.xlu0 %v1401
    %v1433 = vpop.xlane.xlu0 %1432
    %1434 = vadd.xlane.f32.xlu0 %v1403
    %v1435 = vpop.xlane.xlu0 %1434
    %1436 = vadd.xlane.f32.xlu0 %v1405
    %v1437 = vpop.xlane.xlu0 %1436
    %1438 = vadd.xlane.f32.xlu0 %v1407
    %v1439 = vpop.xlane.xlu0 %1438
    %1440 = vadd.xlane.f32.xlu0 %v1409
    %v1441 = vpop.xlane.xlu0 %1440
    %1442 = vadd.xlane.f32.xlu0 %v1411
    %v1443 = vpop.xlane.xlu0 %1442
    %1444 = vadd.xlane.f32.xlu0 %v1413
    %v1445 = vpop.xlane.xlu0 %1444
    %1446 = vadd.xlane.f32.xlu0 %v1415
    %v1447 = vpop.xlane.xlu0 %1446
    %1448 = vadd.xlane.f32.xlu0 %v1417
    %v1449 = vpop.xlane.xlu0 %1448
    %1450 = vadd.xlane.f32.xlu0 %v1419
    %v1451 = vpop.xlane.xlu0 %1450
    %v1452 = vpack.c.bf16 %v1391, %v1389
    %v1453 = vpack.c.bf16 %v1395, %v1393
    %v1454 = vpack.c.bf16 %v1399, %v1397
    %v1455 = vpack.c.bf16 %v1403, %v1401
    %v1456 = vpack.c.bf16 %v1407, %v1405
    %v1457 = vpack.c.bf16 %v1411, %v1409
    %v1458 = vpack.c.bf16 %v1415, %v1413
    %v1459 = vpack.c.bf16 %v1419, %v1417
    %v1460 = vpack.c.bf16 %v1071, %v1068
    %v1461 = vpack.c.bf16 %v1079, %v1076
    %v1462 = vpack.c.bf16 %v1087, %v1084
    %v1463 = vpack.c.bf16 %v1095, %v1092
    %v1464 = vpack.c.bf16 %v1103, %v1100
    %v1465 = vpack.c.bf16 %v1111, %v1108
    %v1466 = vpack.c.bf16 %v1119, %v1116
    %v1467 = vpack.c.bf16 %v1127, %v1124
    %1468 = vmatprep.subr.bf16.mxu0 0
    %1469 = vmatpush1.bf16.msra.mxu0 %v1460
    %1470 = vmatprep.subr.bf16.mxu0 0
    %1471 = vmatpush1.bf16.msra.mxu0 %v1461
    %1472 = vmatprep.subr.bf16.mxu0 0
    %1473 = vmatpush1.bf16.msra.mxu0 %v1462
    %1474 = vmatprep.subr.bf16.mxu0 0
    %1475 = vmatpush1.bf16.msra.mxu0 %v1463
    %1476 = vmatprep.subr.bf16.mxu0 0
    %1477 = vmatpush1.bf16.msra.mxu0 %v1464
    %1478 = vmatprep.subr.bf16.mxu0 0
    %1479 = vmatpush1.bf16.msra.mxu0 %v1465
    %1480 = vmatprep.subr.bf16.mxu0 0
    %1481 = vmatpush1.bf16.msra.mxu0 %v1466
    %1482 = vmatprep.subr.bf16.mxu0 0
    %1483 = vmatpush1.bf16.msra.mxu0 %v1467
    %1484 = vmatprep.subr.bf16.mxu0 0
    %1485 = vmatpush1.bf16.msra.mxu0 0
    %1486 = vmatprep.subr.bf16.mxu0 0
    %1487 = vmatpush1.bf16.msra.mxu0 0
    %1488 = vmatprep.subr.bf16.mxu0 0
    %1489 = vmatpush1.bf16.msra.mxu0 0
    %1490 = vmatprep.subr.bf16.mxu0 0
    %1491 = vmatpush1.bf16.msra.mxu0 0
    %1492 = vmatprep.subr.bf16.mxu0 0
    %1493 = vmatpush1.bf16.msra.mxu0 0
    %1494 = vmatprep.subr.bf16.mxu0 0
    %1495 = vmatpush1.bf16.msra.mxu0 0
    %1496 = vmatprep.subr.bf16.mxu0 0
    %1497 = vmatpush1.bf16.msra.mxu0 0
    %1498 = vmatprep.subr.bf16.mxu0 0
    %1499 = vmatpush1.bf16.msra.mxu0 0
    %1500 = vmatprep.mubr.bf16.mxu0 0
    %1501 = vmatmul.mubr.bf16.gmra.mrb[0].mxu0 %v1452
    %v1502 = vpop.f32.mrb[0].mxu0
    %v1503 = vadd.f32 0.0, %v1502
    %v1504 = vpop.f32.mrb[0].mxu0
    %v1505 = vpop.f32.mrb[0].mxu0
    %v1506 = vadd.f32 0.0, %v1505
    %v1507 = vpop.f32.mrb[0].mxu0
    %1508 = vmatprep.mubr.bf16.mxu0 0
    %1509 = vmatmul.mubr.bf16.gmra.mrb[0].mxu0 %v1453
    %v1510 = vpop.f32.mrb[0].mxu0
    %v1511 = vadd.f32 0.0, %v1510
    %v1512 = vpop.f32.mrb[0].mxu0
    %v1513 = vpop.f32.mrb[0].mxu0
    %v1514 = vadd.f32 0.0, %v1513
    %v1515 = vpop.f32.mrb[0].mxu0
    %1516 = vmatprep.mubr.bf16.mxu0 0
    %1517 = vmatmul.mubr.bf16.gmra.mrb[0].mxu0 %v1454
    %v1518 = vpop.f32.mrb[0].mxu0
    %v1519 = vadd.f32 0.0, %v1518
    %v1520 = vpop.f32.mrb[0].mxu0
    %v1521 = vpop.f32.mrb[0].mxu0
    %v1522 = vadd.f32 0.0, %v1521
    %v1523 = vpop.f32.mrb[0].mxu0
    %1524 = vmatprep.mubr.bf16.mxu0 0
    %1525 = vmatmul.mubr.bf16.gmra.mrb[0].mxu0 %v1455
    %v1526 = vpop.f32.mrb[0].mxu0
    %v1527 = vadd.f32 0.0, %v1526
    %v1528 = vpop.f32.mrb[0].mxu0
    %v1529 = vpop.f32.mrb[0].mxu0
    %v1530 = vadd.f32 0.0, %v1529
    %v1531 = vpop.f32.mrb[0].mxu0
    %1532 = vmatprep.mubr.bf16.mxu0 0
    %1533 = vmatmul.mubr.bf16.gmra.mrb[0].mxu0 %v1456
    %v1534 = vpop.f32.mrb[0].mxu0
    %v1535 = vadd.f32 0.0, %v1534
    %v1536 = vpop.f32.mrb[0].mxu0
    %v1537 = vpop.f32.mrb[0].mxu0
    %v1538 = vadd.f32 0.0, %v1537
    %v1539 = vpop.f32.mrb[0].mxu0
    %1540 = vmatprep.mubr.bf16.mxu0 0
    %1541 = vmatmul.mubr.bf16.gmra.mrb[0].mxu0 %v1457
    %v1542 = vpop.f32.mrb[0].mxu0
    %v1543 = vadd.f32 0.0, %v1542
    %v1544 = vpop.f32.mrb[0].mxu0
    %v1545 = vpop.f32.mrb[0].mxu0
    %v1546 = vadd.f32 0.0, %v1545
    %v1547 = vpop.f32.mrb[0].mxu0
    %1548 = vmatprep.mubr.bf16.mxu0 0
    %1549 = vmatmul.mubr.bf16.gmra.mrb[0].mxu0 %v1458
    %v1550 = vpop.f32.mrb[0].mxu0
    %v1551 = vadd.f32 0.0, %v1550
    %v1552 = vpop.f32.mrb[0].mxu0
    %v1553 = vpop.f32.mrb[0].mxu0
    %v1554 = vadd.f32 0.0, %v1553
    %v1555 = vpop.f32.mrb[0].mxu0
    %1556 = vmatprep.mubr.bf16.mxu0 0
    %1557 = vmatmul.mubr.bf16.gmra.mrb[0].mxu0 %v1459
    %v1558 = vpop.f32.mrb[0].mxu0
    %v1559 = vadd.f32 0.0, %v1558
    %v1560 = vpop.f32.mrb[0].mxu0
    %v1561 = vpop.f32.mrb[0].mxu0
    %v1562 = vadd.f32 0.0, %v1561
    %v1563 = vpop.f32.mrb[0].mxu0
    %1564 = vdwg.mxu0
    %v1565 = vrcp.pop %v1421
    %v1566 = vrcp.pop %v1423
    %v1567 = vrcp.pop %v1425
    %v1568 = vrcp.pop %v1427
    %v1569 = vrcp.pop %v1429
    %v1570 = vrcp.pop %v1431
    %v1571 = vrcp.pop %v1433
    %v1572 = vrcp.pop %v1435
    %v1573 = vrcp.pop %v1437
    %v1574 = vrcp.pop %v1439
    %v1575 = vrcp.pop %v1441
    %v1576 = vrcp.pop %v1443
    %v1577 = vrcp.pop %v1445
    %v1578 = vrcp.pop %v1447
    %v1579 = vrcp.pop %v1449
    %v1580 = vrcp.pop %v1451
    %v1581 = vmul.f32 %v1503, %v1565
    %v1582 = vmul.f32 %v1506, %v1566
    %v1583 = vmul.f32 %v1511, %v1567
    %v1584 = vmul.f32 %v1514, %v1568
    %v1585 = vmul.f32 %v1519, %v1569
    %v1586 = vmul.f32 %v1522, %v1570
    %v1587 = vmul.f32 %v1527, %v1571
    %v1588 = vmul.f32 %v1530, %v1572
    %v1589 = vmul.f32 %v1535, %v1573
    %v1590 = vmul.f32 %v1538, %v1574
    %v1591 = vmul.f32 %v1543, %v1575
    %v1592 = vmul.f32 %v1546, %v1576
    %v1593 = vmul.f32 %v1551, %v1577
    %v1594 = vmul.f32 %v1554, %v1578
    %v1595 = vmul.f32 %v1559, %v1579
    %v1596 = vmul.f32 %v1562, %v1580
    %v1597 = vld [vmem:[%s10] sm:$0x1]
    %v1599 = vlaneseq
    %v1600 = vshrl.u32 %v1599, 7
    %v1601 = vsub.s32 0, %v1600
    %v1602 = vrot.slane %v1597, %v1601
    %v1604 = vadd.f32 %v1581, %v1602
    %v1605 = vadd.f32 %v1582, %v1602
    %v1606 = vadd.f32 %v1583, %v1602
    %v1607 = vadd.f32 %v1584, %v1602
    %v1608 = vadd.f32 %v1585, %v1602
    %v1609 = vadd.f32 %v1586, %v1602
    %v1610 = vadd.f32 %v1587, %v1602
    %v1611 = vadd.f32 %v1588, %v1602
    %v1612 = vadd.f32 %v1589, %v1602
    %v1613 = vadd.f32 %v1590, %v1602
    %v1614 = vadd.f32 %v1591, %v1602
    %v1615 = vadd.f32 %v1592, %v1602
    %v1616 = vadd.f32 %v1593, %v1602
    %v1617 = vadd.f32 %v1594, %v1602
    %v1618 = vadd.f32 %v1595, %v1602
    %v1619 = vadd.f32 %v1596, %v1602
    %v1620 = vmax.f32 %v1604, 0.0
    %v1621 = vmax.f32 %v1605, 0.0
    %v1622 = vmax.f32 %v1606, 0.0
    %v1623 = vmax.f32 %v1607, 0.0
    %v1624 = vmax.f32 %v1608, 0.0
    %v1625 = vmax.f32 %v1609, 0.0
    %v1626 = vmax.f32 %v1610, 0.0
    %v1627 = vmax.f32 %v1611, 0.0
    %v1628 = vmax.f32 %v1612, 0.0
    %v1629 = vmax.f32 %v1613, 0.0
    %v1630 = vmax.f32 %v1614, 0.0
    %v1631 = vmax.f32 %v1615, 0.0
    %v1632 = vmax.f32 %v1616, 0.0
    %v1633 = vmax.f32 %v1617, 0.0
    %v1634 = vmax.f32 %v1618, 0.0
    %v1635 = vmax.f32 %v1619, 0.0
    %v1636 = vld [vmem:[%s13] sm:$0x1]
    %v1638 = vlaneseq
    %v1639 = vshrl.u32 %v1638, 7
    %v1640 = vsub.s32 0, %v1639
    %v1641 = vrot.slane %v1636, %v1640
    %v1643 = vmul.f32 %v1620, %v1641
    %v1644 = vmul.f32 %v1621, %v1641
    %v1645 = vmul.f32 %v1622, %v1641
    %v1646 = vmul.f32 %v1623, %v1641
    %v1647 = vmul.f32 %v1624, %v1641
    %v1648 = vmul.f32 %v1625, %v1641
    %v1649 = vmul.f32 %v1626, %v1641
    %v1650 = vmul.f32 %v1627, %v1641
    %v1651 = vmul.f32 %v1628, %v1641
    %v1652 = vmul.f32 %v1629, %v1641
    %v1653 = vmul.f32 %v1630, %v1641
    %v1654 = vmul.f32 %v1631, %v1641
    %v1655 = vmul.f32 %v1632, %v1641
    %v1656 = vmul.f32 %v1633, %v1641
    %v1657 = vmul.f32 %v1634, %v1641
    %v1658 = vmul.f32 %v1635, %v1641
    %v1659 = vld [vmem:[%s14] sm:$0x1]
    %v1661 = vlaneseq
    %v1662 = vshrl.u32 %v1661, 7
    %v1663 = vsub.s32 0, %v1662
    %v1664 = vrot.slane %v1659, %v1663
    %v1666 = vadd.f32 %v1643, %v1664
    %v1667 = vadd.f32 %v1644, %v1664
    %v1668 = vadd.f32 %v1645, %v1664
    %v1669 = vadd.f32 %v1646, %v1664
    %v1670 = vadd.f32 %v1647, %v1664
    %v1671 = vadd.f32 %v1648, %v1664
    %v1672 = vadd.f32 %v1649, %v1664
    %v1673 = vadd.f32 %v1650, %v1664
    %v1674 = vadd.f32 %v1651, %v1664
    %v1675 = vadd.f32 %v1652, %v1664
    %v1676 = vadd.f32 %v1653, %v1664
    %v1677 = vadd.f32 %v1654, %v1664
    %v1678 = vadd.f32 %v1655, %v1664
    %v1679 = vadd.f32 %v1656, %v1664
    %v1680 = vadd.f32 %v1657, %v1664
    %v1681 = vadd.f32 %v1658, %v1664
    %v1682 = vld [vmem:[#allocation4] sm:$0xff]
    %v1683 = vpack.c.bf16 %v1682, %v1682
    %v1684 = vpack.c.bf16 %v1667, %v1666
    %v1685 = vpack.c.bf16 %v1669, %v1668
    %v1686 = vpack.c.bf16 %v1671, %v1670
    %v1687 = vpack.c.bf16 %v1673, %v1672
    %v1688 = vpack.c.bf16 %v1675, %v1674
    %v1689 = vpack.c.bf16 %v1677, %v1676
    %v1690 = vpack.c.bf16 %v1679, %v1678
    %v1691 = vpack.c.bf16 %v1681, %v1680
    %1692 = vmatprep.subr.bf16.mxu0 0
    %1693 = vmatpush1.bf16.msra.mxu0 %v1684
    %1694 = vmatprep.subr.bf16.mxu0 0
    %1695 = vmatpush1.bf16.msra.mxu0 %v1685
    %1696 = vmatprep.subr.bf16.mxu0 0
    %1697 = vmatpush1.bf16.msra.mxu0 %v1686
    %1698 = vmatprep.subr.bf16.mxu0 0
    %1699 = vmatpush1.bf16.msra.mxu0 %v1687
    %1700 = vmatprep.subr.bf16.mxu0 0
    %1701 = vmatpush1.bf16.msra.mxu0 %v1688
    %1702 = vmatprep.subr.bf16.mxu0 0
    %1703 = vmatpush1.bf16.msra.mxu0 %v1689
    %1704 = vmatprep.subr.bf16.mxu0 0
    %1705 = vmatpush1.bf16.msra.mxu0 %v1690
    %1706 = vmatprep.subr.bf16.mxu0 0
    %1707 = vmatpush1.bf16.msra.mxu0 %v1691
    %1708 = vmatprep.subr.bf16.mxu0 0
    %1709 = vmatpush1.bf16.msra.mxu0 0
    %1710 = vmatprep.subr.bf16.mxu0 0
    %1711 = vmatpush1.bf16.msra.mxu0 0
    %1712 = vmatprep.subr.bf16.mxu0 0
    %1713 = vmatpush1.bf16.msra.mxu0 0
    %1714 = vmatprep.subr.bf16.mxu0 0
    %1715 = vmatpush1.bf16.msra.mxu0 0
    %1716 = vmatprep.subr.bf16.mxu0 0
    %1717 = vmatpush1.bf16.msra.mxu0 0
    %1718 = vmatprep.subr.bf16.mxu0 0
    %1719 = vmatpush1.bf16.msra.mxu0 0
    %1720 = vmatprep.subr.bf16.mxu0 0
    %1721 = vmatpush1.bf16.msra.mxu0 0
    %1722 = vmatprep.subr.bf16.mxu0 0
    %1723 = vmatpush1.bf16.msra.mxu0 0
    %1724 = vmatprep.mubr.bf16.mxu0 0
    %1725 = vmatmul.mubr.bf16.gmra.mrb[0].mxu0 %v1683
    %v1726 = vpop.f32.mrb[0].mxu0
    %v1727 = vadd.f32 0.0, %v1726
    %v1728 = vpop.f32.mrb[0].mxu0
    %v1729 = vpop.f32.mrb[0].mxu0
    %v1730 = vpop.f32.mrb[0].mxu0
    %1731 = vdwg.mxu0
    %v1732 = vld [vmem:[#allocation9] sm:$0xff]
    %v1733 = vld [vmem:[#allocation9 + $0x8] sm:$0xff]
    %v1734 = vld [vmem:[#allocation9 + $0x10] sm:$0xff]
    %v1735 = vld [vmem:[#allocation9 + $0x18] sm:$0xff]
    %v1736 = vld [vmem:[#allocation9 + $0x20] sm:$0xff]
    %v1737 = vld [vmem:[#allocation9 + $0x28] sm:$0xff]
    %v1738 = vld [vmem:[#allocation9 + $0x30] sm:$0xff]
    %v1739 = vld [vmem:[#allocation9 + $0x38] sm:$0xff]
    %v1740 = vld [vmem:[#allocation9 + $0x40] sm:$0xff]
    %v1741 = vld [vmem:[#allocation9 + $0x48] sm:$0xff]
    %v1742 = vld [vmem:[#allocation9 + $0x50] sm:$0xff]
    %v1743 = vld [vmem:[#allocation9 + $0x58] sm:$0xff]
    %v1744 = vld [vmem:[#allocation9 + $0x60] sm:$0xff]
    %v1745 = vld [vmem:[#allocation9 + $0x68] sm:$0xff]
    %v1746 = vld [vmem:[#allocation9 + $0x70] sm:$0xff]
    %v1747 = vld [vmem:[#allocation9 + $0x78] sm:$0xff]
    %v1748 = vld [vmem:[%s16] sm:$0x1]
    %v1750 = vlaneseq
    %v1751 = vshrl.u32 %v1750, 7
    %v1752 = vsub.s32 0, %v1751
    %v1753 = vrot.slane %v1748, %v1752
    %1755 = vmatprep.subr.mxu0 0.0
    %1756 = vmatpush1.msra.mxu0 %v1732
    %1757 = vmatprep.subr.mxu0 0.0
    %1758 = vmatpush1.msra.mxu0 %v1733
    %1759 = vmatprep.subr.mxu0 0.0
    %1760 = vmatpush1.msra.mxu0 %v1734
    %1761 = vmatprep.subr.mxu0 0.0
    %1762 = vmatpush1.msra.mxu0 %v1735
    %1763 = vmatprep.subr.mxu0 0.0
    %1764 = vmatpush1.msra.mxu0 %v1736
    %1765 = vmatprep.subr.mxu0 0.0
    %1766 = vmatpush1.msra.mxu0 %v1737
    %1767 = vmatprep.subr.mxu0 0.0
    %1768 = vmatpush1.msra.mxu0 %v1738
    %1769 = vmatprep.subr.mxu0 0.0
    %1770 = vmatpush1.msra.mxu0 %v1739
    %1771 = vmatprep.subr.mxu0 0.0
    %1772 = vmatpush1.msra.mxu0 %v1740
    %1773 = vmatprep.subr.mxu0 0.0
    %1774 = vmatpush1.msra.mxu0 %v1741
    %1775 = vmatprep.subr.mxu0 0.0
    %1776 = vmatpush1.msra.mxu0 %v1742
    %1777 = vmatprep.subr.mxu0 0.0
    %1778 = vmatpush1.msra.mxu0 %v1743
    %1779 = vmatprep.subr.mxu0 0.0
    %1780 = vmatpush1.msra.mxu0 %v1744
    %1781 = vmatprep.subr.mxu0 0.0
    %1782 = vmatpush1.msra.mxu0 %v1745
    %1783 = vmatprep.subr.mxu0 0.0
    %1784 = vmatpush1.msra.mxu0 %v1746
    %1785 = vmatprep.subr.mxu0 0.0
    %1786 = vmatpush1.msra.mxu0 %v1747
    %1787 = vmatprep.subr.mxu0 0.0
    %1788 = vmatpush1.msra.mxu0 0.0
    %1789 = vmatprep.subr.mxu0 0.0
    %1790 = vmatpush1.msra.mxu0 0.0
    %1791 = vmatprep.subr.mxu0 0.0
    %1792 = vmatpush1.msra.mxu0 0.0
    %1793 = vmatprep.subr.mxu0 0.0
    %1794 = vmatpush1.msra.mxu0 0.0
    %1795 = vmatprep.subr.mxu0 0.0
    %1796 = vmatpush1.msra.mxu0 0.0
    %1797 = vmatprep.subr.mxu0 0.0
    %1798 = vmatpush1.msra.mxu0 0.0
    %1799 = vmatprep.subr.mxu0 0.0
    %1800 = vmatpush1.msra.mxu0 0.0
    %1801 = vmatprep.subr.mxu0 0.0
    %1802 = vmatpush1.msra.mxu0 0.0
    %1803 = vmatprep.subr.mxu0 0.0
    %1804 = vmatpush1.msra.mxu0 0.0
    %1805 = vmatprep.subr.mxu0 0.0
    %1806 = vmatpush1.msra.mxu0 0.0
    %1807 = vmatprep.subr.mxu0 0.0
    %1808 = vmatpush1.msra.mxu0 0.0
    %1809 = vmatprep.subr.mxu0 0.0
    %1810 = vmatpush1.msra.mxu0 0.0
    %1811 = vmatprep.subr.mxu0 0.0
    %1812 = vmatpush1.msra.mxu0 0.0
    %1813 = vmatprep.subr.mxu0 0.0
    %1814 = vmatpush1.msra.mxu0 0.0
    %1815 = vmatprep.subr.mxu0 0.0
    %1816 = vmatpush1.msra.mxu0 0.0
    %1817 = vmatprep.subr.mxu0 0.0
    %1818 = vmatpush1.msra.mxu0 0.0
    %1819 = vmatprep.mubr.f32.mxu0 0.0
    %1820 = vmatmul.mubr.f32.gmra.mrb[0].mxu0 %v1727
    %v1821 = vpop.f32.mrb[0].mxu0
    %v1822 = vadd.f32 %v1753, %v1821
    %v1823 = vpop.f32.mrb[0].mxu0
    %1824 = vdwg.mxu0
    %v1825 = vmax.f32 %v1822, 0.0
    %v1826 = vld [vmem:[#allocation10] sm:$0xff]
    %v1827 = vld [vmem:[#allocation10 + $0x8] sm:$0xff]
    %v1828 = vld [vmem:[#allocation10 + $0x10] sm:$0xff]
    %v1829 = vld [vmem:[#allocation10 + $0x18] sm:$0xff]
    %v1830 = vld [vmem:[#allocation10 + $0x20] sm:$0xff]
    %v1831 = vld [vmem:[#allocation10 + $0x28] sm:$0xff]
    %v1832 = vld [vmem:[#allocation10 + $0x30] sm:$0xff]
    %v1833 = vld [vmem:[#allocation10 + $0x38] sm:$0xff]
    %v1834 = vld [vmem:[#allocation10 + $0x40] sm:$0xff]
    %v1835 = vld [vmem:[#allocation10 + $0x48] sm:$0xff]
    %v1836 = vld [vmem:[#allocation10 + $0x50] sm:$0xff]
    %v1837 = vld [vmem:[#allocation10 + $0x58] sm:$0xff]
    %v1838 = vld [vmem:[#allocation10 + $0x60] sm:$0xff]
    %v1839 = vld [vmem:[#allocation10 + $0x68] sm:$0xff]
    %v1840 = vld [vmem:[#allocation10 + $0x70] sm:$0xff]
    %v1841 = vld [vmem:[#allocation10 + $0x78] sm:$0xff]
    %v1842 = vld [vmem:[%s18] sm:$0x1]
    %v1844 = vlaneseq
    %v1845 = vshrl.u32 %v1844, 7
    %v1846 = vsub.s32 0, %v1845
    %v1847 = vrot.slane %v1842, %v1846
    %1849 = vmatprep.subr.mxu0 0.0
    %1850 = vmatpush1.msra.mxu0 %v1826
    %1851 = vmatprep.subr.mxu0 0.0
    %1852 = vmatpush1.msra.mxu0 %v1827
    %1853 = vmatprep.subr.mxu0 0.0
    %1854 = vmatpush1.msra.mxu0 %v1828
    %1855 = vmatprep.subr.mxu0 0.0
    %1856 = vmatpush1.msra.mxu0 %v1829
    %1857 = vmatprep.subr.mxu0 0.0
    %1858 = vmatpush1.msra.mxu0 %v1830
    %1859 = vmatprep.subr.mxu0 0.0
    %1860 = vmatpush1.msra.mxu0 %v1831
    %1861 = vmatprep.subr.mxu0 0.0
    %1862 = vmatpush1.msra.mxu0 %v1832
    %1863 = vmatprep.subr.mxu0 0.0
    %1864 = vmatpush1.msra.mxu0 %v1833
    %1865 = vmatprep.subr.mxu0 0.0
    %1866 = vmatpush1.msra.mxu0 %v1834
    %1867 = vmatprep.subr.mxu0 0.0
    %1868 = vmatpush1.msra.mxu0 %v1835
    %1869 = vmatprep.subr.mxu0 0.0
    %1870 = vmatpush1.msra.mxu0 %v1836
    %1871 = vmatprep.subr.mxu0 0.0
    %1872 = vmatpush1.msra.mxu0 %v1837
    %1873 = vmatprep.subr.mxu0 0.0
    %1874 = vmatpush1.msra.mxu0 %v1838
    %1875 = vmatprep.subr.mxu0 0.0
    %1876 = vmatpush1.msra.mxu0 %v1839
    %1877 = vmatprep.subr.mxu0 0.0
    %1878 = vmatpush1.msra.mxu0 %v1840
    %1879 = vmatprep.subr.mxu0 0.0
    %1880 = vmatpush1.msra.mxu0 %v1841
    %1881 = vmatprep.subr.mxu0 0.0
    %1882 = vmatpush1.msra.mxu0 0.0
    %1883 = vmatprep.subr.mxu0 0.0
    %1884 = vmatpush1.msra.mxu0 0.0
    %1885 = vmatprep.subr.mxu0 0.0
    %1886 = vmatpush1.msra.mxu0 0.0
    %1887 = vmatprep.subr.mxu0 0.0
    %1888 = vmatpush1.msra.mxu0 0.0
    %1889 = vmatprep.subr.mxu0 0.0
    %1890 = vmatpush1.msra.mxu0 0.0
    %1891 = vmatprep.subr.mxu0 0.0
    %1892 = vmatpush1.msra.mxu0 0.0
    %1893 = vmatprep.subr.mxu0 0.0
    %1894 = vmatpush1.msra.mxu0 0.0
    %1895 = vmatprep.subr.mxu0 0.0
    %1896 = vmatpush1.msra.mxu0 0.0
    %1897 = vmatprep.subr.mxu0 0.0
    %1898 = vmatpush1.msra.mxu0 0.0
    %1899 = vmatprep.subr.mxu0 0.0
    %1900 = vmatpush1.msra.mxu0 0.0
    %1901 = vmatprep.subr.mxu0 0.0
    %1902 = vmatpush1.msra.mxu0 0.0
    %1903 = vmatprep.subr.mxu0 0.0
    %1904 = vmatpush1.msra.mxu0 0.0
    %1905 = vmatprep.subr.mxu0 0.0
    %1906 = vmatpush1.msra.mxu0 0.0
    %1907 = vmatprep.subr.mxu0 0.0
    %1908 = vmatpush1.msra.mxu0 0.0
    %1909 = vmatprep.subr.mxu0 0.0
    %1910 = vmatpush1.msra.mxu0 0.0
    %1911 = vmatprep.subr.mxu0 0.0
    %1912 = vmatpush1.msra.mxu0 0.0
    %1913 = vmatprep.mubr.f32.mxu0 0.0
    %1914 = vmatmul.mubr.f32.gmra.mrb[0].mxu0 %v1825
    %v1915 = vpop.f32.mrb[0].mxu0
    %v1916 = vadd.f32 %v1847, %v1915
    %v1917 = vpop.f32.mrb[0].mxu0
    %1918 = vdwg.mxu0
    %v1919 = vmax.f32 %v1916, 0.0
    %v1920 = vld [vmem:[#allocation12] sm:$0xff]
    %v1921 = vld [vmem:[#allocation12 + $0x8] sm:$0xff]
    %v1922 = vld [vmem:[#allocation12 + $0x10] sm:$0xff]
    %v1923 = vld [vmem:[#allocation12 + $0x18] sm:$0xff]
    %v1924 = vld [vmem:[#allocation12 + $0x20] sm:$0xff]
    %v1925 = vld [vmem:[#allocation12 + $0x28] sm:$0xff]
    %v1926 = vld [vmem:[#allocation12 + $0x30] sm:$0xff]
    %v1927 = vld [vmem:[#allocation12 + $0x38] sm:$0xff]
    %v1928 = vld [vmem:[#allocation12 + $0x40] sm:$0xff]
    %v1929 = vld [vmem:[#allocation12 + $0x48] sm:$0xff]
    %v1930 = vld [vmem:[#allocation12 + $0x50] sm:$0xff]
    %v1931 = vld [vmem:[#allocation12 + $0x58] sm:$0xff]
    %v1932 = vld [vmem:[#allocation12 + $0x60] sm:$0xff]
    %v1933 = vld [vmem:[#allocation12 + $0x68] sm:$0xff]
    %v1934 = vld [vmem:[#allocation12 + $0x70] sm:$0xff]
    %v1935 = vld [vmem:[#allocation12 + $0x78] sm:$0xff]
    %v1936 = vld [vmem:[%s20] sm:$0x1]
    %v1938 = vlaneseq
    %v1939 = vshrl.u32 %v1938, 7
    %v1940 = vsub.s32 0, %v1939
    %v1941 = vrot.slane %v1936, %v1940
    %1943 = vmatprep.subr.mxu0 0.0
    %1944 = vmatpush1.msra.mxu0 %v1920
    %1945 = vmatprep.subr.mxu0 0.0
    %1946 = vmatpush1.msra.mxu0 %v1921
    %1947 = vmatprep.subr.mxu0 0.0
    %1948 = vmatpush1.msra.mxu0 %v1922
    %1949 = vmatprep.subr.mxu0 0.0
    %1950 = vmatpush1.msra.mxu0 %v1923
    %1951 = vmatprep.subr.mxu0 0.0
    %1952 = vmatpush1.msra.mxu0 %v1924
    %1953 = vmatprep.subr.mxu0 0.0
    %1954 = vmatpush1.msra.mxu0 %v1925
    %1955 = vmatprep.subr.mxu0 0.0
    %1956 = vmatpush1.msra.mxu0 %v1926
    %1957 = vmatprep.subr.mxu0 0.0
    %1958 = vmatpush1.msra.mxu0 %v1927
    %1959 = vmatprep.subr.mxu0 0.0
    %1960 = vmatpush1.msra.mxu0 %v1928
    %1961 = vmatprep.subr.mxu0 0.0
    %1962 = vmatpush1.msra.mxu0 %v1929
    %1963 = vmatprep.subr.mxu0 0.0
    %1964 = vmatpush1.msra.mxu0 %v1930
    %1965 = vmatprep.subr.mxu0 0.0
    %1966 = vmatpush1.msra.mxu0 %v1931
    %1967 = vmatprep.subr.mxu0 0.0
    %1968 = vmatpush1.msra.mxu0 %v1932
    %1969 = vmatprep.subr.mxu0 0.0
    %1970 = vmatpush1.msra.mxu0 %v1933
    %1971 = vmatprep.subr.mxu0 0.0
    %1972 = vmatpush1.msra.mxu0 %v1934
    %1973 = vmatprep.subr.mxu0 0.0
    %1974 = vmatpush1.msra.mxu0 %v1935
    %1975 = vmatprep.subr.mxu0 0.0
    %1976 = vmatpush1.msra.mxu0 0.0
    %1977 = vmatprep.subr.mxu0 0.0
    %1978 = vmatpush1.msra.mxu0 0.0
    %1979 = vmatprep.subr.mxu0 0.0
    %1980 = vmatpush1.msra.mxu0 0.0
    %1981 = vmatprep.subr.mxu0 0.0
    %1982 = vmatpush1.msra.mxu0 0.0
    %1983 = vmatprep.subr.mxu0 0.0
    %1984 = vmatpush1.msra.mxu0 0.0
    %1985 = vmatprep.subr.mxu0 0.0
    %1986 = vmatpush1.msra.mxu0 0.0
    %1987 = vmatprep.subr.mxu0 0.0
    %1988 = vmatpush1.msra.mxu0 0.0
    %1989 = vmatprep.subr.mxu0 0.0
    %1990 = vmatpush1.msra.mxu0 0.0
    %1991 = vmatprep.subr.mxu0 0.0
    %1992 = vmatpush1.msra.mxu0 0.0
    %1993 = vmatprep.subr.mxu0 0.0
    %1994 = vmatpush1.msra.mxu0 0.0
    %1995 = vmatprep.subr.mxu0 0.0
    %1996 = vmatpush1.msra.mxu0 0.0
    %1997 = vmatprep.subr.mxu0 0.0
    %1998 = vmatpush1.msra.mxu0 0.0
    %1999 = vmatprep.subr.mxu0 0.0
    %2000 = vmatpush1.msra.mxu0 0.0
    %2001 = vmatprep.subr.mxu0 0.0
    %2002 = vmatpush1.msra.mxu0 0.0
    %2003 = vmatprep.subr.mxu0 0.0
    %2004 = vmatpush1.msra.mxu0 0.0
    %2005 = vmatprep.subr.mxu0 0.0
    %2006 = vmatpush1.msra.mxu0 0.0
    %2007 = vmatprep.mubr.f32.mxu0 0.0
    %2008 = vmatmul.mubr.f32.gmra.mrb[0].mxu0 %v1919
    %v2009 = vpop.f32.mrb[0].mxu0
    %v2010 = vadd.f32 %v1941, %v2009
    %v2011 = vpop.f32.mrb[0].mxu0
    %2012 = vdwg.mxu0
    %v2013 = vmax.f32 %v2010, 0.0
    %v2014 = vld [vmem:[#allocation13] sm:$0xff]
    %v2015 = vld [vmem:[#allocation13 + $0x8] sm:$0xff]
    %v2016 = vld [vmem:[#allocation13 + $0x10] sm:$0xff]
    %v2017 = vld [vmem:[#allocation13 + $0x18] sm:$0xff]
    %v2018 = vld [vmem:[#allocation13 + $0x20] sm:$0xff]
    %v2019 = vld [vmem:[#allocation13 + $0x28] sm:$0xff]
    %v2020 = vld [vmem:[#allocation13 + $0x30] sm:$0xff]
    %v2021 = vld [vmem:[#allocation13 + $0x38] sm:$0xff]
    %v2022 = vld [vmem:[#allocation13 + $0x40] sm:$0xff]
    %v2023 = vld [vmem:[#allocation13 + $0x48] sm:$0xff]
    %v2024 = vld [vmem:[#allocation13 + $0x50] sm:$0xff]
    %v2025 = vld [vmem:[#allocation13 + $0x58] sm:$0xff]
    %v2026 = vld [vmem:[#allocation13 + $0x60] sm:$0xff]
    %v2027 = vld [vmem:[#allocation13 + $0x68] sm:$0xff]
    %v2028 = vld [vmem:[#allocation13 + $0x70] sm:$0xff]
    %v2029 = vld [vmem:[#allocation13 + $0x78] sm:$0xff]
    %v2030 = vld [vmem:[%s22] sm:$0x1]
    %v2032 = vlaneseq
    %v2033 = vshrl.u32 %v2032, 7
    %v2034 = vsub.s32 0, %v2033
    %v2035 = vrot.slane %v2030, %v2034
    %2037 = vmatprep.subr.mxu0 0.0
    %2038 = vmatpush1.msra.mxu0 %v2014
    %2039 = vmatprep.subr.mxu0 0.0
    %2040 = vmatpush1.msra.mxu0 %v2015
    %2041 = vmatprep.subr.mxu0 0.0
    %2042 = vmatpush1.msra.mxu0 %v2016
    %2043 = vmatprep.subr.mxu0 0.0
    %2044 = vmatpush1.msra.mxu0 %v2017
    %2045 = vmatprep.subr.mxu0 0.0
    %2046 = vmatpush1.msra.mxu0 %v2018
    %2047 = vmatprep.subr.mxu0 0.0
    %2048 = vmatpush1.msra.mxu0 %v2019
    %2049 = vmatprep.subr.mxu0 0.0
    %2050 = vmatpush1.msra.mxu0 %v2020
    %2051 = vmatprep.subr.mxu0 0.0
    %2052 = vmatpush1.msra.mxu0 %v2021
    %2053 = vmatprep.subr.mxu0 0.0
    %2054 = vmatpush1.msra.mxu0 %v2022
    %2055 = vmatprep.subr.mxu0 0.0
    %2056 = vmatpush1.msra.mxu0 %v2023
    %2057 = vmatprep.subr.mxu0 0.0
    %2058 = vmatpush1.msra.mxu0 %v2024
    %2059 = vmatprep.subr.mxu0 0.0
    %2060 = vmatpush1.msra.mxu0 %v2025
    %2061 = vmatprep.subr.mxu0 0.0
    %2062 = vmatpush1.msra.mxu0 %v2026
    %2063 = vmatprep.subr.mxu0 0.0
    %2064 = vmatpush1.msra.mxu0 %v2027
    %2065 = vmatprep.subr.mxu0 0.0
    %2066 = vmatpush1.msra.mxu0 %v2028
    %2067 = vmatprep.subr.mxu0 0.0
    %2068 = vmatpush1.msra.mxu0 %v2029
    %2069 = vmatprep.subr.mxu0 0.0
    %2070 = vmatpush1.msra.mxu0 0.0
    %2071 = vmatprep.subr.mxu0 0.0
    %2072 = vmatpush1.msra.mxu0 0.0
    %2073 = vmatprep.subr.mxu0 0.0
    %2074 = vmatpush1.msra.mxu0 0.0
    %2075 = vmatprep.subr.mxu0 0.0
    %2076 = vmatpush1.msra.mxu0 0.0
    %2077 = vmatprep.subr.mxu0 0.0
    %2078 = vmatpush1.msra.mxu0 0.0
    %2079 = vmatprep.subr.mxu0 0.0
    %2080 = vmatpush1.msra.mxu0 0.0
    %2081 = vmatprep.subr.mxu0 0.0
    %2082 = vmatpush1.msra.mxu0 0.0
    %2083 = vmatprep.subr.mxu0 0.0
    %2084 = vmatpush1.msra.mxu0 0.0
    %2085 = vmatprep.subr.mxu0 0.0
    %2086 = vmatpush1.msra.mxu0 0.0
    %2087 = vmatprep.subr.mxu0 0.0
    %2088 = vmatpush1.msra.mxu0 0.0
    %2089 = vmatprep.subr.mxu0 0.0
    %2090 = vmatpush1.msra.mxu0 0.0
    %2091 = vmatprep.subr.mxu0 0.0
    %2092 = vmatpush1.msra.mxu0 0.0
    %2093 = vmatprep.subr.mxu0 0.0
    %2094 = vmatpush1.msra.mxu0 0.0
    %2095 = vmatprep.subr.mxu0 0.0
    %2096 = vmatpush1.msra.mxu0 0.0
    %2097 = vmatprep.subr.mxu0 0.0
    %2098 = vmatpush1.msra.mxu0 0.0
    %2099 = vmatprep.subr.mxu0 0.0
    %2100 = vmatpush1.msra.mxu0 0.0
    %2101 = vmatprep.mubr.f32.mxu0 0.0
    %2102 = vmatmul.mubr.f32.gmra.mrb[0].mxu0 %v2013
    %v2103 = vpop.f32.mrb[0].mxu0
    %v2104 = vadd.f32 %v2035, %v2103
    %v2105 = vpop.f32.mrb[0].mxu0
    %2106 = vdwg.mxu0
    %v2107 = vlaneseq
    %v2108 = vand.u32 %v2107, 127
    %vm2109 = vcmp.lt.s32.totalorder %v2108, 2
    %v2110 = vsel %vm2109, %v2104, -1e+30
    %2111 = vmax.xlane.f32.xlu0 %v2110
    %v2112 = vpop.xlane.xlu0 %2111
    %v2113 = vsub.f32 %v2110, %v2112
    %v2114 = vmul.f32 %v2113, 1.442695
    %v2115 = vpow.pop %v2114
    %2116 = vadd.xlane.f32.xlu0 %v2115
    %v2117 = vpop.xlane.xlu0 %2116
    %v2118 = vlog2.pop %v2117
    %v2119 = vmul.f32 %v2118, 0.6931472
    %v2120 = vsub.f32 %v2113, %v2119
    %2121 = vst [vmem:[%s23] sm:$0xff] %v2120
    // Predicated region
    $region126: #{gat_model_forward.1} parent=1 // pred_check
      _
    $region127: #{gat_model_forward.1} parent=1 // pred_check_branch
      %2123 = sbr.rel (0) target = $region129
    $region128: #{gat_model_forward.1} parent=1 // pred_region
      _
    $region129: #{gat_model_forward.1} parent=1 // pred_fallthru
      _
    // Predicated region
    $region130: #{gat_model_forward.1} parent=1 // pred_check
      _
    $region131: #{gat_model_forward.1} parent=1 // pred_check_branch
      %2125 = sbr.rel (0) target = $region133
    $region132: #{gat_model_forward.1} parent=1 // pred_region
      _
    $region133: #{gat_model_forward.1} parent=1 // pred_fallthru
      _
    %2126 = vsyncpa [#allocation3], 1
    %2127 = vsyncpa [#allocation5], 1
    %2128 = vsyncpa [#allocation8], 1
    %2129 = vsyncpa [#allocation11], 1
    %2130 = vsyncpa [#allocation14], 1

</llo_original>
